<compile_context>
chip_gen: v7x
topology: tpu7x:2x2x1
jax: 0.10.0
libtpu: 0.0.40
codegen_flags: <defaults>
</compile_context>

<pallas_src>
import functools
from typing import NamedTuple

import jax
import jax.numpy as jnp
from jax.experimental import pallas as pl
from jax.experimental.pallas import tpu as pltpu


def _round_up(x, m):
    return (x + m - 1) // m * m


class DQNParams(NamedTuple):
    w1: jax.Array  # (state_dim, hidden)  bf16
    b1: jax.Array  # (1, hidden)          f32
    w2: jax.Array  # (hidden, hidden)     bf16
    b2: jax.Array  # (1, hidden)          f32
    w3: jax.Array  # (hidden, n_pad)      bf16  (action_dim zero-padded to 128 lanes)
    b3: jax.Array  # (1, n_pad)           f32


def prepare_params(w1, b1, w2, b2, w3, b3):
    """One-time parameter prep (do NOT call per forward).

    Weights expected as (in_features, out_features); biases as (out,) or (1, out).
    Casts weights to bf16, biases to f32, and zero-pads layer 3 to 128 output lanes.
    """
    action_dim = w3.shape[1]
    n_pad = _round_up(action_dim, 128)
    w3p = jnp.pad(w3, ((0, 0), (0, n_pad - action_dim)))
    b3p = jnp.pad(b3.reshape(1, -1), ((0, 0), (0, n_pad - action_dim)))
    return DQNParams(
        w1=w1.astype(jnp.bfloat16),
        b1=b1.reshape(1, -1).astype(jnp.float32),
        w2=w2.astype(jnp.bfloat16),
        b2=b2.reshape(1, -1).astype(jnp.float32),
        w3=w3p.astype(jnp.bfloat16),
        b3=b3p.astype(jnp.float32),
    )


def dqn_kernel(x_ref, w1_ref, b1_ref, w2_ref, b2_ref, w3_ref, b3_ref, o_ref):
    # layer 1: Linear(state_dim, 512) + ReLU   (bf16 inputs, f32 accumulation)
    h1 = jnp.dot(x_ref[...], w1_ref[...], preferred_element_type=jnp.float32)
    h1 = jnp.maximum(h1 + b1_ref[...], 0.0).astype(jnp.bfloat16)
    # layer 2: Linear(512, 512) + ReLU
    h2 = jnp.dot(h1, w2_ref[...], preferred_element_type=jnp.float32)
    h2 = jnp.maximum(h2 + b2_ref[...], 0.0).astype(jnp.bfloat16)
    # layer 3: Linear(512, action_dim_padded)  (no activation; padded cols are zero)
    o_ref[...] = (
        jnp.dot(h2, w3_ref[...], preferred_element_type=jnp.float32) + b3_ref[...]
    )


def _choose_tile_b(batch, cap):
    """Pick a batch tile (multiple of 8) so grid has >=2 steps when possible
    (v7x megacore sharding) while keeping padding waste small."""
    b8 = _round_up(max(batch, 1), 8)
    if b8 < 16:
        return b8  # too small to split
    steps = max(2, pl.cdiv(b8, cap))
    return _round_up(pl.cdiv(b8, steps), 8)


@functools.partial(jax.jit, static_argnames=("action_dim", "tile_b_cap"))
def dqn_forward(x, params: DQNParams, *, action_dim, tile_b_cap=512):
    """x:(B, state_dim) f32; params from prepare_params() -> (B, action_dim) f32."""
    batch, state_dim = x.shape
    hidden = params.w1.shape[1]
    n_pad = params.w3.shape[1]

    tile_b = _choose_tile_b(batch, tile_b_cap)
    b_pad = _round_up(batch, tile_b)

    # Per-call work kept minimal: bf16 cast of x, plus a single jnp.pad only if
    # the batch is not a tile multiple (padded rows are sliced off below).
    x_bf = x.astype(jnp.bfloat16)
    if b_pad != batch:
        x_bf = jnp.pad(x_bf, ((0, b_pad - batch), (0, 0)))

    grid = (b_pad // tile_b,)
    const = lambda i: (0, 0)  # weights/biases: same block every step -> VMEM-resident

    # Explicit VMEM budget: double-buffered weights/biases + x/out tiles,
    # f32 h1/h2 intermediates, plus headroom for compiler scratch.
    weight_bytes = 2 * (params.w1.size + params.w2.size + params.w3.size) * 2
    bias_bytes = 2 * (params.b1.size + params.b2.size + params.b3.size) * 4
    io_bytes = 2 * tile_b * state_dim * 2 + 2 * tile_b * n_pad * 4
    act_bytes = 2 * tile_b * hidden * 4
    vmem_limit = int(weight_bytes + bias_bytes + io_bytes + act_bytes + (4 << 20))

    out = pl.pallas_call(
        dqn_kernel,
        out_shape=jax.ShapeDtypeStruct((b_pad, n_pad), jnp.float32),
        grid_spec=pltpu.PrefetchScalarGridSpec(
            num_scalar_prefetch=0,
            grid=grid,
            in_specs=[
                pl.BlockSpec((tile_b, state_dim), lambda i: (i, 0)),  # x tile
                pl.BlockSpec((state_dim, hidden), const),             # W1
                pl.BlockSpec((1, hidden), const),                     # b1
                pl.BlockSpec((hidden, hidden), const),                # W2
                pl.BlockSpec((1, hidden), const),                     # b2
                pl.BlockSpec((hidden, n_pad), const),                 # W3 (padded)
                pl.BlockSpec((1, n_pad), const),                      # b3 (padded)
            ],
            out_specs=pl.BlockSpec((tile_b, n_pad), lambda i: (i, 0)),
        ),
        compiler_params=pltpu.CompilerParams(
            dimension_semantics=("parallel",),
            vmem_limit_bytes=vmem_limit,
        ),
    )(x_bf, params.w1, params.b1, params.w2, params.b2, params.w3, params.b3)

    return out[:batch, :action_dim]


def init_linear(key, fan_in, fan_out):
    """Deterministic init mimicking PyTorch Linear (uniform +/- 1/sqrt(fan_in)).
    Weight returned as (fan_in, fan_out) for the x @ W layout."""
    kw, kb = jax.random.split(key)
    bound = 1.0 / jnp.sqrt(fan_in)
    w = jax.random.uniform(kw, (fan_in, fan_out), jnp.float32, -bound, bound)
    b = jax.random.uniform(kb, (1, fan_out), jnp.float32, -bound, bound)
    return w, b


if __name__ == "__main__":
    # Shapes consistent with the DQN module: hidden=512 is fixed by the module,
    # batch=256 is the module's batch_size, small state/action dims.
    batch, state_dim, hidden, action_dim = 256, 32, 512, 4

    key = jax.random.PRNGKey(0)
    kx, k1, k2, k3 = jax.random.split(key, 4)

    x = jax.random.normal(kx, (batch, state_dim), jnp.float32)
    w1, b1 = init_linear(k1, state_dim, hidden)
    w2, b2 = init_linear(k2, hidden, hidden)
    w3, b3 = init_linear(k3, hidden, action_dim)

    # One-time parameter preparation (hoisted out of the per-call path).
    params = prepare_params(w1, b1, w2, b2, w3, b3)
    params = jax.block_until_ready(params)

    out = dqn_forward(x, params, action_dim=action_dim)
    out = jax.block_until_ready(out)
    assert out.shape == (batch, action_dim)

    # Pure-JAX reference with the same bf16-input / f32-accumulate numerics.
    def bf(a):
        return a.astype(jnp.bfloat16).astype(jnp.float32)

    hp = jax.lax.Precision.HIGHEST
    h1 = jnp.maximum(jnp.dot(bf(x), bf(w1), precision=hp) + b1, 0.0)
    h2 = jnp.maximum(jnp.dot(bf(h1), bf(w2), precision=hp) + b2, 0.0)
    ref = jnp.dot(bf(h2), bf(w3), precision=hp) + b3
    assert jnp.allclose(out, ref, atol=5e-3, rtol=5e-3), "mismatch vs bf16 reference"

    # Sanity vs. full-f32 math (looser tolerance: bf16 inputs).
    h1f = jnp.maximum(jnp.dot(x, w1, precision=hp) + b1, 0.0)
    h2f = jnp.maximum(jnp.dot(h1f, w2, precision=hp) + b2, 0.0)
    reff = jnp.dot(h2f, w3, precision=hp) + b3
    assert jnp.allclose(out, reff, atol=5e-2, rtol=5e-2), "mismatch vs f32 reference"

    print("KERNEL_OK")
</pallas_src>

<mosaic_0001>
module attributes {stable_mosaic.version = 11 : i64} {
  func.func @dqn_kernel(%arg0: i32, %arg1: memref<128x32xbf16, #tpu.memory_space<vmem>>, %arg2: memref<32x512xbf16, #tpu.memory_space<vmem>>, %arg3: memref<1x512xf32, #tpu.memory_space<vmem>>, %arg4: memref<512x512xbf16, #tpu.memory_space<vmem>>, %arg5: memref<1x512xf32, #tpu.memory_space<vmem>>, %arg6: memref<512x128xbf16, #tpu.memory_space<vmem>>, %arg7: memref<1x128xf32, #tpu.memory_space<vmem>>, %arg8: memref<128x128xf32, #tpu.memory_space<vmem>>) attributes {dimension_semantics = [#tpu.dimension_semantics<parallel>], iteration_bounds = array<i64: 2>, scalar_prefetch = 0 : i64, scratch_operands = 0 : i64, tpu.core_type = #tpu.core_type<tc>, window_params = [{transform_indices = @transform_0, window_bounds = array<i64: 128, 32>}, {pipeline_mode = #tpu.pipeline_mode<synchronous>, transform_indices = @transform_1, window_bounds = array<i64: 32, 512>}, {pipeline_mode = #tpu.pipeline_mode<synchronous>, transform_indices = @transform_2, window_bounds = array<i64: 1, 512>}, {pipeline_mode = #tpu.pipeline_mode<synchronous>, transform_indices = @transform_3, window_bounds = array<i64: 512, 512>}, {pipeline_mode = #tpu.pipeline_mode<synchronous>, transform_indices = @transform_4, window_bounds = array<i64: 1, 512>}, {pipeline_mode = #tpu.pipeline_mode<synchronous>, transform_indices = @transform_5, window_bounds = array<i64: 512, 128>}, {pipeline_mode = #tpu.pipeline_mode<synchronous>, transform_indices = @transform_6, window_bounds = array<i64: 1, 128>}, {transform_indices = @transform_7, window_bounds = array<i64: 128, 128>}]} {
    %c0 = arith.constant 0 : index
    %c0_0 = arith.constant 0 : index
    %0 = vector.load %arg1[%c0, %c0_0] : memref<128x32xbf16, #tpu.memory_space<vmem>>, vector<128x32xbf16>
    %c0_1 = arith.constant 0 : index
    %c0_2 = arith.constant 0 : index
    %1 = vector.load %arg2[%c0_1, %c0_2] : memref<32x512xbf16, #tpu.memory_space<vmem>>, vector<32x512xbf16>
    %cst = arith.constant dense<0.000000e+00> : vector<128x512xf32>
    %2 = tpu.matmul %0, %1, %cst {dimension_numbers = #tpu.dot_dimension_numbers<[1], [0], [0], [1], [0, 0, 1, 1], [], []>} : vector<128x32xbf16>, vector<32x512xbf16>, vector<128x512xf32> -> vector<128x512xf32>
    %c0_3 = arith.constant 0 : index
    %c0_4 = arith.constant 0 : index
    %3 = vector.load %arg3[%c0_3, %c0_4] : memref<1x512xf32, #tpu.memory_space<vmem>>, vector<1x512xf32>
    %4 = vector.broadcast %3 : vector<1x512xf32> to vector<128x512xf32>
    %5 = arith.addf %2, %4 : vector<128x512xf32>
    %cst_5 = arith.constant 0.000000e+00 : f32
    %6 = vector.broadcast %cst_5 : f32 to vector<128x512xf32>
    %7 = arith.maximumf %5, %6 : vector<128x512xf32>
    %8 = arith.truncf %7 : vector<128x512xf32> to vector<128x512xbf16>
    %c0_6 = arith.constant 0 : index
    %c0_7 = arith.constant 0 : index
    %9 = vector.load %arg4[%c0_6, %c0_7] : memref<512x512xbf16, #tpu.memory_space<vmem>>, vector<512x512xbf16>
    %cst_8 = arith.constant dense<0.000000e+00> : vector<128x512xf32>
    %10 = tpu.matmul %8, %9, %cst_8 {dimension_numbers = #tpu.dot_dimension_numbers<[1], [0], [0], [1], [0, 0, 1, 1], [], []>} : vector<128x512xbf16>, vector<512x512xbf16>, vector<128x512xf32> -> vector<128x512xf32>
    %c0_9 = arith.constant 0 : index
    %c0_10 = arith.constant 0 : index
    %11 = vector.load %arg5[%c0_9, %c0_10] : memref<1x512xf32, #tpu.memory_space<vmem>>, vector<1x512xf32>
    %12 = vector.broadcast %11 : vector<1x512xf32> to vector<128x512xf32>
    %13 = arith.addf %10, %12 : vector<128x512xf32>
    %cst_11 = arith.constant 0.000000e+00 : f32
    %14 = vector.broadcast %cst_11 : f32 to vector<128x512xf32>
    %15 = arith.maximumf %13, %14 : vector<128x512xf32>
    %16 = arith.truncf %15 : vector<128x512xf32> to vector<128x512xbf16>
    %c0_12 = arith.constant 0 : index
    %c0_13 = arith.constant 0 : index
    %17 = vector.load %arg6[%c0_12, %c0_13] : memref<512x128xbf16, #tpu.memory_space<vmem>>, vector<512x128xbf16>
    %cst_14 = arith.constant dense<0.000000e+00> : vector<128x128xf32>
    %18 = tpu.matmul %16, %17, %cst_14 {dimension_numbers = #tpu.dot_dimension_numbers<[1], [0], [0], [1], [0, 0, 1, 1], [], []>} : vector<128x512xbf16>, vector<512x128xbf16>, vector<128x128xf32> -> vector<128x128xf32>
    %c0_15 = arith.constant 0 : index
    %c0_16 = arith.constant 0 : index
    %19 = vector.load %arg7[%c0_15, %c0_16] : memref<1x128xf32, #tpu.memory_space<vmem>>, vector<1x128xf32>
    %20 = vector.broadcast %19 : vector<1x128xf32> to vector<128x128xf32>
    %21 = arith.addf %18, %20 : vector<128x128xf32>
    %c0_17 = arith.constant 0 : index
    %c0_18 = arith.constant 0 : index
    %22 = vector.load %arg8[%c0_17, %c0_18] : memref<128x128xf32, #tpu.memory_space<vmem>>, vector<128x128xf32>
    tpu.vector_store %arg8[%c0_17, %c0_18], %21 {strides = array<i32>} : memref<128x128xf32, #tpu.memory_space<vmem>>, vector<128x128xf32>,
    return
  }
  func.func @transform_0(%arg0: i32) -> (i32, i32) {
    %c0_i32 = arith.constant 0 : i32
    %c0_i32_0 = arith.constant 0 : i32
    return %arg0, %c0_i32 : i32, i32
  }
  func.func @transform_1(%arg0: i32) -> (i32, i32) {
    %c0_i32 = arith.constant 0 : i32
    %c0_i32_0 = arith.constant 0 : i32
    %c0_i32_1 = arith.constant 0 : i32
    return %c0_i32, %c0_i32_0 : i32, i32
  }
  func.func @transform_2(%arg0: i32) -> (i32, i32) {
    %c0_i32 = arith.constant 0 : i32
    %c0_i32_0 = arith.constant 0 : i32
    %c0_i32_1 = arith.constant 0 : i32
    return %c0_i32, %c0_i32_0 : i32, i32
  }
  func.func @transform_3(%arg0: i32) -> (i32, i32) {
    %c0_i32 = arith.constant 0 : i32
    %c0_i32_0 = arith.constant 0 : i32
    %c0_i32_1 = arith.constant 0 : i32
    return %c0_i32, %c0_i32_0 : i32, i32
  }
  func.func @transform_4(%arg0: i32) -> (i32, i32) {
    %c0_i32 = arith.constant 0 : i32
    %c0_i32_0 = arith.constant 0 : i32
    %c0_i32_1 = arith.constant 0 : i32
    return %c0_i32, %c0_i32_0 : i32, i32
  }
  func.func @transform_5(%arg0: i32) -> (i32, i32) {
    %c0_i32 = arith.constant 0 : i32
    %c0_i32_0 = arith.constant 0 : i32
    %c0_i32_1 = arith.constant 0 : i32
    return %c0_i32, %c0_i32_0 : i32, i32
  }
  func.func @transform_6(%arg0: i32) -> (i32, i32) {
    %c0_i32 = arith.constant 0 : i32
    %c0_i32_0 = arith.constant 0 : i32
    %c0_i32_1 = arith.constant 0 : i32
    return %c0_i32, %c0_i32_0 : i32, i32
  }
  func.func @transform_7(%arg0: i32) -> (i32, i32) {
    %c0_i32 = arith.constant 0 : i32
    %c0_i32_0 = arith.constant 0 : i32
    return %arg0, %c0_i32 : i32, i32
  }
}

</mosaic_0001>

<llo_original>
// kernel: dqn_forward.1
$region0: #{dqn_forward.1}
  #allocation0 [shape = 'u32[]', space=smem, size = 0x4, offset = 0x4, fixed_abs, tag = 'smem constant byte address 0x4 - core index']
  #allocation1 [shape = 'u32[144,128]{1,0:T(1,128)}', space=vmem, size = 0x12000, scoped, tag = 'internal scratch']
  %s0 = inlined_call_operand.vmem [shape: bf16[256,32], index: 0, kind: input, shape index: {}]
  %s1 = inlined_call_operand.hbm [shape: bf16[32,512], index: 1, kind: input, shape index: {}]
  %s2 = inlined_call_operand.vmem [shape: f32[1,512], index: 2, kind: input, shape index: {}]
  %s3 = inlined_call_operand.hbm [shape: bf16[512,512], index: 3, kind: input, shape index: {}]
  %s4 = inlined_call_operand.vmem [shape: f32[1,512], index: 4, kind: input, shape index: {}]
  %s5 = inlined_call_operand.vmem [shape: bf16[512,128], index: 5, kind: input, shape index: {}]
  %s6 = inlined_call_operand.vmem [shape: f32[1,128], index: 6, kind: input, shape index: {}]
  %s7 = inlined_call_operand.vmem [shape: f32[256,128], index: 7, kind: output, shape index: {}]
  %s8 = sld [smem:[#allocation0]]
  $region69: #{dqn_forward.1} parent=0
    _
  %s10 = ssub.s32 1, %s8
  %s11 = scalar_select 0, %s10, %s8
  $region1: #{dqn_forward.1} parent=0
    #allocation2 [shape = 'u8[32768]{0}', space=vmem, size = 0x8000, scoped, tag = 'input window, operand 1, single buffered']
    #allocation3 [shape = 's32[2]{0}', space=sflag, size = 0x8, scoped, tag = 'scoped memory for dqn_forward.1']
    #allocation4 [shape = 'u8[524288]{0}', space=vmem, size = 0x80000, scoped, tag = 'input window, operand 3, single buffered']
    #allocation5 [shape = 's32[1]{0}', space=sflag, size = 0x4, scoped, tag = 'scoped memory for dqn_forward.1']
    %12 = vsyncpa [#allocation3], 0
    %13 = vsyncpa [#allocation5], 0
    loop: start=0, step=1, limit=4
    $region2: #{dqn_forward.1} parent=1 // loop_pre_header
      _
    $region3: #{dqn_forward.1} parent=1 // loop_header
      %s15 = sphi 0, %s19
      %p16 = scmp.ge.s32.totalorder %s15, 4
      %s25 = sphi 0, %s27
      %s28 = sphi 0, %s25
      %s29 = sphi 0, %s28
      %s45 = sphi 0, %s29
      %s49 = sphi 0, %s49
      %s51 = sphi 0, %s49
      %s52 = sphi 0, %s51
      %s66 = sphi 0, %s52
      %s70 = sphi 0, %s70
      %s72 = sphi 0, %s70
      %s73 = sphi 0, %s72
      %s87 = sphi 0, %s73
      %s91 = sphi 0, %s91
      %s93 = sphi 0, %s91
      %s94 = sphi 0, %s93
      %s108 = sphi 0, %s94
      %s112 = sphi 0, %s112
      %s114 = sphi 0, %s112
      %s115 = sphi 0, %s114
      %s129 = sphi 0, %s115
      %s133 = sphi 0, %s133
      %s135 = sphi 0, %s133
      %s136 = sphi 0, %s135
      %s150 = sphi 0, %s136
      %s154 = sphi 0, %s154
      %s156 = sphi 0, %s154
      %s157 = sphi 0, %s156
      %s171 = sphi 0, %s157
      %s177 = sphi 0, %s179
      %s180 = sphi 0, %s177
      %s181 = sphi 0, %s180
      %s197 = sphi 0, %s181
    $region4: #{dqn_forward.1} parent=1 // loop_header_branch
      %18 = sbr.rel (%p16) target = $region8
    $region5: #{dqn_forward.1} parent=1 // loop_body
      %s20 = ssub.s32 %s15, 1
      %s21 = ssub.s32 %s15, 2
      %s22 = sadd.s32 %s15, 1
      %s23 = ssub.s32 %s15, %s22
      %p24 = scmp.eq.s32.totalorder %s23, 0
      %s26 = sadd.s32 %s25, 1
      %s27 = scalar_select %p24, %s25, %s26
      %p30 = pneg %p24
      %p31 = scmp.eq.s32.totalorder %s15, 1
      %p32 = por %p30, %p31
      %p33 = scmp.ne.s32.totalorder %s25, %s28
      %p34 = scmp.eq.s32.totalorder %s15, 0
      %p35 = por %p33, %p34
      %p36 = scmp.ne.s32.totalorder %s25, %s28
      %p37 = scmp.eq.s32.totalorder %s20, 1
      %p38 = por %p36, %p37
      %p39 = scmp.ne.s32.totalorder %s28, %s29
      %p40 = scmp.eq.s32.totalorder %s20, 0
      %p41 = por %p39, %p40
      %p42 = scmp.ne.s32.totalorder %s28, %s29
      %p43 = scmp.eq.s32.totalorder %s21, 1
      %p44 = por %p42, %p43
      %p46 = scmp.ne.s32.totalorder %s29, %s45
      %p47 = scmp.eq.s32.totalorder %s21, 0
      %p48 = por %p46, %p47
      %s50 = sadd.s32 %s49, 1
      %p53 = scmp.eq.s32.totalorder %s15, 1
      %p54 = scmp.ne.s32.totalorder %s49, %s51
      %p55 = scmp.eq.s32.totalorder %s15, 0
      %p56 = por %p54, %p55
      %p57 = scmp.ne.s32.totalorder %s49, %s51
      %p58 = scmp.eq.s32.totalorder %s20, 1
      %p59 = por %p57, %p58
      %p60 = scmp.ne.s32.totalorder %s51, %s52
      %p61 = scmp.eq.s32.totalorder %s20, 0
      %p62 = por %p60, %p61
      %p63 = scmp.ne.s32.totalorder %s51, %s52
      %p64 = scmp.eq.s32.totalorder %s21, 1
      %p65 = por %p63, %p64
      %p67 = scmp.ne.s32.totalorder %s52, %s66
      %p68 = scmp.eq.s32.totalorder %s21, 0
      %p69 = por %p67, %p68
      %s71 = sadd.s32 %s70, 1
      %p74 = scmp.eq.s32.totalorder %s15, 1
      %p75 = scmp.ne.s32.totalorder %s70, %s72
      %p76 = scmp.eq.s32.totalorder %s15, 0
      %p77 = por %p75, %p76
      %p78 = scmp.ne.s32.totalorder %s70, %s72
      %p79 = scmp.eq.s32.totalorder %s20, 1
      %p80 = por %p78, %p79
      %p81 = scmp.ne.s32.totalorder %s72, %s73
      %p82 = scmp.eq.s32.totalorder %s20, 0
      %p83 = por %p81, %p82
      %p84 = scmp.ne.s32.totalorder %s72, %s73
      %p85 = scmp.eq.s32.totalorder %s21, 1
      %p86 = por %p84, %p85
      %p88 = scmp.ne.s32.totalorder %s73, %s87
      %p89 = scmp.eq.s32.totalorder %s21, 0
      %p90 = por %p88, %p89
      %s92 = sadd.s32 %s91, 1
      %p95 = scmp.eq.s32.totalorder %s15, 1
      %p96 = scmp.ne.s32.totalorder %s91, %s93
      %p97 = scmp.eq.s32.totalorder %s15, 0
      %p98 = por %p96, %p97
      %p99 = scmp.ne.s32.totalorder %s91, %s93
      %p100 = scmp.eq.s32.totalorder %s20, 1
      %p101 = por %p99, %p100
      %p102 = scmp.ne.s32.totalorder %s93, %s94
      %p103 = scmp.eq.s32.totalorder %s20, 0
      %p104 = por %p102, %p103
      %p105 = scmp.ne.s32.totalorder %s93, %s94
      %p106 = scmp.eq.s32.totalorder %s21, 1
      %p107 = por %p105, %p106
      %p109 = scmp.ne.s32.totalorder %s94, %s108
      %p110 = scmp.eq.s32.totalorder %s21, 0
      %p111 = por %p109, %p110
      %s113 = sadd.s32 %s112, 1
      %p116 = scmp.eq.s32.totalorder %s15, 1
      %p117 = scmp.ne.s32.totalorder %s112, %s114
      %p118 = scmp.eq.s32.totalorder %s15, 0
      %p119 = por %p117, %p118
      %p120 = scmp.ne.s32.totalorder %s112, %s114
      %p121 = scmp.eq.s32.totalorder %s20, 1
      %p122 = por %p120, %p121
      %p123 = scmp.ne.s32.totalorder %s114, %s115
      %p124 = scmp.eq.s32.totalorder %s20, 0
      %p125 = por %p123, %p124
      %p126 = scmp.ne.s32.totalorder %s114, %s115
      %p127 = scmp.eq.s32.totalorder %s21, 1
      %p128 = por %p126, %p127
      %p130 = scmp.ne.s32.totalorder %s115, %s129
      %p131 = scmp.eq.s32.totalorder %s21, 0
      %p132 = por %p130, %p131
      %s134 = sadd.s32 %s133, 1
      %p137 = scmp.eq.s32.totalorder %s15, 1
      %p138 = scmp.ne.s32.totalorder %s133, %s135
      %p139 = scmp.eq.s32.totalorder %s15, 0
      %p140 = por %p138, %p139
      %p141 = scmp.ne.s32.totalorder %s133, %s135
      %p142 = scmp.eq.s32.totalorder %s20, 1
      %p143 = por %p141, %p142
      %p144 = scmp.ne.s32.totalorder %s135, %s136
      %p145 = scmp.eq.s32.totalorder %s20, 0
      %p146 = por %p144, %p145
      %p147 = scmp.ne.s32.totalorder %s135, %s136
      %p148 = scmp.eq.s32.totalorder %s21, 1
      %p149 = por %p147, %p148
      %p151 = scmp.ne.s32.totalorder %s136, %s150
      %p152 = scmp.eq.s32.totalorder %s21, 0
      %p153 = por %p151, %p152
      %s155 = sadd.s32 %s154, 1
      %p158 = scmp.eq.s32.totalorder %s15, 1
      %p159 = scmp.ne.s32.totalorder %s154, %s156
      %p160 = scmp.eq.s32.totalorder %s15, 0
      %p161 = por %p159, %p160
      %p162 = scmp.ne.s32.totalorder %s154, %s156
      %p163 = scmp.eq.s32.totalorder %s20, 1
      %p164 = por %p162, %p163
      %p165 = scmp.ne.s32.totalorder %s156, %s157
      %p166 = scmp.eq.s32.totalorder %s20, 0
      %p167 = por %p165, %p166
      %p168 = scmp.ne.s32.totalorder %s156, %s157
      %p169 = scmp.eq.s32.totalorder %s21, 1
      %p170 = por %p168, %p169
      %p172 = scmp.ne.s32.totalorder %s157, %s171
      %p173 = scmp.eq.s32.totalorder %s21, 0
      %p174 = por %p172, %p173
      %s175 = ssub.s32 %s15, %s22
      %p176 = scmp.eq.s32.totalorder %s175, 0
      %s178 = sadd.s32 %s177, 1
      %s179 = scalar_select %p176, %s177, %s178
      %p182 = pneg %p176
      %p183 = scmp.eq.s32.totalorder %s15, 1
      %p184 = por %p182, %p183
      %p185 = scmp.ne.s32.totalorder %s177, %s180
      %p186 = scmp.eq.s32.totalorder %s15, 0
      %p187 = por %p185, %p186
      %p188 = scmp.ne.s32.totalorder %s177, %s180
      %p189 = scmp.eq.s32.totalorder %s20, 1
      %p190 = por %p188, %p189
      %p191 = scmp.ne.s32.totalorder %s180, %s181
      %p192 = scmp.eq.s32.totalorder %s20, 0
      %p193 = por %p191, %p192
      %p194 = scmp.ne.s32.totalorder %s180, %s181
      %p195 = scmp.eq.s32.totalorder %s21, 1
      %p196 = por %p194, %p195
      %p198 = scmp.ne.s32.totalorder %s181, %s197
      %p199 = scmp.eq.s32.totalorder %s21, 0
      %p200 = por %p198, %p199
      %p201 = scmp.le.s32.totalorder 1, %s15
      %p202 = scmp.lt.s32.totalorder %s15, 3
      %p203 = pnand %p201, %p202
      %p204 = pneg %p203
      // Predicated region
      $region9: #{dqn_forward.1} parent=5 // pred_check
        _
      $region10: #{dqn_forward.1} parent=5 // pred_check_branch
        %206 = sbr.rel (%p203) target = $region12
      $region11: #{dqn_forward.1} parent=5 // pred_region
        %s207 = ssub.s32 %s15, 1
        // Predicated region
        $region13: #{dqn_forward.1} parent=11 // pred_check
          %p208 = pneg %p62
        $region14: #{dqn_forward.1} parent=11 // pred_check_branch
          %210 = sbr.rel (%p208) target = $region16
        $region15: #{dqn_forward.1} parent=11 // pred_region
          %s212 = ssub.s32 1024, 1024
          %213 = vsyncadd [#allocation3], %s212
          %s214 = sshll.u32 [#allocation2], 4
          %s215 = int_to_ptr.vmem [resolvable:$true] %s214
          %220 = dma.hbm_to_vmem [thread:$0]  %s1, 1024, %s215, [#allocation3], 256, 256, 16
        $region16: #{dqn_forward.1} parent=11 // pred_fallthru
          _
        // Predicated region
        $region17: #{dqn_forward.1} parent=11 // pred_check
          %p221 = pneg %p83
        $region18: #{dqn_forward.1} parent=11 // pred_check_branch
          %223 = sbr.rel (%p221) target = $region20
        $region19: #{dqn_forward.1} parent=11 // pred_region
          _
        $region20: #{dqn_forward.1} parent=11 // pred_fallthru
          _
        // Predicated region
        $region21: #{dqn_forward.1} parent=11 // pred_check
          %p224 = pneg %p104
        $region22: #{dqn_forward.1} parent=11 // pred_check_branch
          %226 = sbr.rel (%p224) target = $region24
        $region23: #{dqn_forward.1} parent=11 // pred_region
          %s228 = ssub.s32 16384, 16384
          %229 = vsyncadd [#allocation5], %s228
          %s230 = sshll.u32 [#allocation4], 4
          %s231 = int_to_ptr.vmem [resolvable:$true] %s230
          %236 = dma.hbm_to_vmem [thread:$0]  %s3, 16384, %s231, [#allocation5], 256, 256, 16
        $region24: #{dqn_forward.1} parent=11 // pred_fallthru
          _
        // Predicated region
        $region25: #{dqn_forward.1} parent=11 // pred_check
          %p237 = pneg %p125
        $region26: #{dqn_forward.1} parent=11 // pred_check_branch
          %239 = sbr.rel (%p237) target = $region28
        $region27: #{dqn_forward.1} parent=11 // pred_region
          _
        $region28: #{dqn_forward.1} parent=11 // pred_fallthru
          _
        // Predicated region
        $region29: #{dqn_forward.1} parent=11 // pred_check
          %p240 = pneg %p146
        $region30: #{dqn_forward.1} parent=11 // pred_check_branch
          %242 = sbr.rel (%p240) target = $region32
        $region31: #{dqn_forward.1} parent=11 // pred_region
          _
        $region32: #{dqn_forward.1} parent=11 // pred_fallthru
          _
        // Predicated region
        $region33: #{dqn_forward.1} parent=11 // pred_check
          %p243 = pneg %p167
        $region34: #{dqn_forward.1} parent=11 // pred_check_branch
          %245 = sbr.rel (%p243) target = $region36
        $region35: #{dqn_forward.1} parent=11 // pred_region
          _
        $region36: #{dqn_forward.1} parent=11 // pred_fallthru
          _
      $region12: #{dqn_forward.1} parent=5 // pred_fallthru
        _
      %p246 = scmp.lt.s32.totalorder %s15, 2
      // Predicated region
      $region37: #{dqn_forward.1} parent=5 // pred_check
        %p247 = pneg %p246
      $region38: #{dqn_forward.1} parent=5 // pred_check_branch
        %249 = sbr.rel (%p247) target = $region40
      $region39: #{dqn_forward.1} parent=5 // pred_region
        // Predicated region
        $region41: #{dqn_forward.1} parent=39 // pred_check
          %p250 = pneg %p35
        $region42: #{dqn_forward.1} parent=39 // pred_check_branch
          %252 = sbr.rel (%p250) target = $region44
        $region43: #{dqn_forward.1} parent=39 // pred_region
          %s253 = smul.u32 16, %s15
          %p254 = scmp.lt.s32.totalorder %s253, 31
          %s255 = scalar_select %p254, %s253, 31
          %s256 = smul.addr %s255, 4
          %s257 = scalar_lea.vmem %s0, %s256
          %s258 = smul.u32 16, %s15
        $region44: #{dqn_forward.1} parent=39 // pred_fallthru
          _
      $region40: #{dqn_forward.1} parent=5 // pred_fallthru
        _
      %p259 = scmp.le.s32.totalorder 1, %s15
      %p260 = scmp.lt.s32.totalorder %s15, 3
      %p261 = pnand %p259, %p260
      %p262 = pneg %p261
      // Predicated region
      $region45: #{dqn_forward.1} parent=5 // pred_check
        _
      $region46: #{dqn_forward.1} parent=5 // pred_check_branch
        %264 = sbr.rel (%p261) target = $region48
      $region47: #{dqn_forward.1} parent=5 // pred_region
        %s265 = ssub.s32 %s15, 1
        // Predicated region
        $region49: #{dqn_forward.1} parent=47 // pred_check
          %p266 = pneg %p62
        $region50: #{dqn_forward.1} parent=47 // pred_check_branch
          %268 = sbr.rel (%p266) target = $region52
        $region51: #{dqn_forward.1} parent=47 // pred_region
          %269 = dma.done [#allocation3], 1024
        $region52: #{dqn_forward.1} parent=47 // pred_fallthru
          _
        // Predicated region
        $region53: #{dqn_forward.1} parent=47 // pred_check
          %p270 = pneg %p104
        $region54: #{dqn_forward.1} parent=47 // pred_check_branch
          %272 = sbr.rel (%p270) target = $region56
        $region55: #{dqn_forward.1} parent=47 // pred_region
          %273 = dma.done [#allocation5], 16384
        $region56: #{dqn_forward.1} parent=47 // pred_fallthru
          _
        %s274 = smul.u32 16, %s20
        %p275 = scmp.lt.s32.totalorder %s274, 31
        %s276 = scalar_select %p275, %s274, 31
        %s277 = smul.addr %s276, 4
        %s278 = scalar_lea.vmem %s0, %s277
        %p279 = pneg %p41
        %p280 = pneg %p38
        %p281 = pneg %p62
        %p282 = pneg %p59
        %p283 = pneg %p83
        %p284 = pneg %p80
        %p285 = pneg %p104
        %p286 = pneg %p101
        %p287 = pneg %p125
        %p288 = pneg %p122
        %p289 = pneg %p146
        %p290 = pneg %p143
        %p291 = pneg %p167
        %p292 = pneg %p164
        %p293 = pneg %p193
        %p294 = pneg %p190
        %s295 = smul.u32 16, %s20
        %p296 = scmp.lt.s32.totalorder %s295, 31
        %s297 = scalar_select %p296, %s295, 31
        %s298 = smul.addr %s297, 8
        %s299 = scalar_lea.vmem %s7, %s298
        %s300 = smul.u32 16, %s20
        %p301 = scmp.lt.s32.totalorder %s300, 31
        %s302 = scalar_select %p301, %s300, 31
        %s303 = smul.addr %s302, 4
        %s304 = scalar_lea.vmem %s0, %s303
        %s305 = smul.u32 16, %s20
        %s306 = smul.u32 16, %s20
        %p307 = scmp.lt.s32.totalorder %s306, 31
        %s308 = scalar_select %p307, %s306, 31
        %s309 = smul.addr %s308, 8
        %s310 = scalar_lea.vmem %s7, %s309
        %s311 = smul.u32 16, %s20
        %v313 = vld [vmem:[%s304] sm:$0xf]
        %v314 = vld [vmem:[%s304 + $0x4] sm:$0xf]
        %v315 = vld [vmem:[%s304 + $0x8] sm:$0xf]
        %v316 = vld [vmem:[%s304 + $0xc] sm:$0xf]
        %v317 = vld [vmem:[%s304 + $0x10] sm:$0xf]
        %v318 = vld [vmem:[%s304 + $0x14] sm:$0xf]
        %v319 = vld [vmem:[%s304 + $0x18] sm:$0xf]
        %v320 = vld [vmem:[%s304 + $0x1c] sm:$0xf]
        %v321 = vld [vmem:[%s304 + $0x20] sm:$0xf]
        %v322 = vld [vmem:[%s304 + $0x24] sm:$0xf]
        %v323 = vld [vmem:[%s304 + $0x28] sm:$0xf]
        %v324 = vld [vmem:[%s304 + $0x2c] sm:$0xf]
        %v325 = vld [vmem:[%s304 + $0x30] sm:$0xf]
        %v326 = vld [vmem:[%s304 + $0x34] sm:$0xf]
        %v327 = vld [vmem:[%s304 + $0x38] sm:$0xf]
        %v328 = vld [vmem:[%s304 + $0x3c] sm:$0xf]
        %v329 = vld [vmem:[#allocation2] sm:$0xff]
        %v330 = vld [vmem:[#allocation2 + $0x8] sm:$0xff]
        %v331 = vld [vmem:[#allocation2 + $0x10] sm:$0xff]
        %v332 = vld [vmem:[#allocation2 + $0x18] sm:$0xff]
        %v333 = vld [vmem:[#allocation2 + $0x20] sm:$0xff]
        %v334 = vld [vmem:[#allocation2 + $0x28] sm:$0xff]
        %v335 = vld [vmem:[#allocation2 + $0x30] sm:$0xff]
        %v336 = vld [vmem:[#allocation2 + $0x38] sm:$0xff]
        %v337 = vld [vmem:[%s2] sm:$0xf]
        %v339 = vlaneseq
        %v340 = vshrl.u32 %v339, 7
        %v341 = vsub.s32 0, %v340
        %v342 = vrot.slane %v337, %v341
        %v343 = vlaneseq
        %v344 = vshrl.u32 %v343, 7
        %v345 = vsub.s32 1, %v344
        %v346 = vrot.slane %v337, %v345
        %v347 = vlaneseq
        %v348 = vshrl.u32 %v347, 7
        %v349 = vsub.s32 2, %v348
        %v350 = vrot.slane %v337, %v349
        %v351 = vlaneseq
        %v352 = vshrl.u32 %v351, 7
        %v353 = vsub.s32 3, %v352
        %v354 = vrot.slane %v337, %v353
        %v375 = vunpack.c.l.b16 %v313
        %v376 = vunpack.c.l.b16 %v314
        %v377 = vunpack.c.l.b16 %v315
        %v378 = vunpack.c.l.b16 %v316
        %v379 = vunpack.c.l.b16 %v317
        %v380 = vunpack.c.l.b16 %v318
        %v381 = vunpack.c.l.b16 %v319
        %v382 = vunpack.c.l.b16 %v320
        %v383 = vunpack.c.l.b16 %v321
        %v384 = vunpack.c.l.b16 %v322
        %v385 = vunpack.c.l.b16 %v323
        %v386 = vunpack.c.l.b16 %v324
        %v387 = vunpack.c.l.b16 %v325
        %v388 = vunpack.c.l.b16 %v326
        %v389 = vunpack.c.l.b16 %v327
        %v390 = vunpack.c.l.b16 %v328
        %v391 = vpack.c.b16 %v376, %v375
        %v392 = vpack.c.b16 %v378, %v377
        %v393 = vpack.c.b16 %v380, %v379
        %v394 = vpack.c.b16 %v382, %v381
        %v395 = vpack.c.b16 %v384, %v383
        %v396 = vpack.c.b16 %v386, %v385
        %v397 = vpack.c.b16 %v388, %v387
        %v398 = vpack.c.b16 %v390, %v389
        %v407 = vunpack.c.l.b16 %v329
        %v408 = vunpack.c.h.b16 %v329
        %v409 = vunpack.c.l.b16 %v330
        %v410 = vunpack.c.h.b16 %v330
        %v411 = vunpack.c.l.b16 %v331
        %v412 = vunpack.c.h.b16 %v331
        %v413 = vunpack.c.l.b16 %v332
        %v414 = vunpack.c.h.b16 %v332
        %v415 = vunpack.c.l.b16 %v333
        %v416 = vunpack.c.h.b16 %v333
        %v417 = vunpack.c.l.b16 %v334
        %v418 = vunpack.c.h.b16 %v334
        %v419 = vunpack.c.l.b16 %v335
        %v420 = vunpack.c.h.b16 %v335
        %v421 = vunpack.c.l.b16 %v336
        %v422 = vunpack.c.h.b16 %v336
        %v423 = vpack.c.b16 %v411, %v407
        %v424 = vpack.c.b16 %v412, %v408
        %v425 = vpack.c.b16 %v413, %v409
        %v426 = vpack.c.b16 %v414, %v410
        %v427 = vpack.c.b16 %v419, %v415
        %v428 = vpack.c.b16 %v420, %v416
        %v429 = vpack.c.b16 %v421, %v417
        %v430 = vpack.c.b16 %v422, %v418
        %vm439 = vcmask 261120
        %v441 = vsel %vm439, %v391, 0
        %v444 = vsel %vm439, %v392, 0
        %v447 = vsel %vm439, %v393, 0
        %v450 = vsel %vm439, %v394, 0
        %v453 = vsel %vm439, %v395, 0
        %v456 = vsel %vm439, %v396, 0
        %v459 = vsel %vm439, %v397, 0
        %v462 = vsel %vm439, %v398, 0
        %464 = vmatprep.subr.bf16.mxu0 %v424
        %465 = vmatpush1.bf16.msra.mxu0 %v423
        %466 = vmatprep.subr.bf16.mxu0 %v428
        %467 = vmatpush1.bf16.msra.mxu0 %v427
        %468 = vmatprep.subr.bf16.mxu0 0
        %469 = vmatpush1.bf16.msra.mxu0 0
        %470 = vmatprep.subr.bf16.mxu0 0
        %471 = vmatpush1.bf16.msra.mxu0 0
        %472 = vmatprep.subr.bf16.mxu0 0
        %473 = vmatpush1.bf16.msra.mxu0 0
        %474 = vmatprep.subr.bf16.mxu0 0
        %475 = vmatpush1.bf16.msra.mxu0 0
        %476 = vmatprep.subr.bf16.mxu0 0
        %477 = vmatpush1.bf16.msra.mxu0 0
        %478 = vmatprep.subr.bf16.mxu0 0
        %479 = vmatpush1.bf16.msra.mxu0 0
        %480 = vmatprep.subr.bf16.mxu0 0
        %481 = vmatpush1.bf16.msra.mxu0 0
        %482 = vmatprep.subr.bf16.mxu0 0
        %483 = vmatpush1.bf16.msra.mxu0 0
        %484 = vmatprep.subr.bf16.mxu0 0
        %485 = vmatpush1.bf16.msra.mxu0 0
        %486 = vmatprep.subr.bf16.mxu0 0
        %487 = vmatpush1.bf16.msra.mxu0 0
        %488 = vmatprep.subr.bf16.mxu0 0
        %489 = vmatpush1.bf16.msra.mxu0 0
        %490 = vmatprep.subr.bf16.mxu0 0
        %491 = vmatpush1.bf16.msra.mxu0 0
        %492 = vmatprep.subr.bf16.mxu0 0
        %493 = vmatpush1.bf16.msra.mxu0 0
        %494 = vmatprep.subr.bf16.mxu0 0
        %495 = vmatpush1.bf16.msra.mxu0 0
        %496 = vmatprep.mubr.bf16.mxu0 0
        %497 = vmatmul.mubr.bf16.gmra.mrb[0].mxu0 %v441
        %v498 = vpop.f32.mrb[0].mxu0
        %v499 = vadd.f32 %v342, %v498
        %v500 = vpop.f32.mrb[0].mxu0
        %v501 = vadd.f32 %v346, %v500
        %v502 = vpop.f32.mrb[0].mxu0
        %v503 = vadd.f32 %v342, %v502
        %v504 = vpop.f32.mrb[0].mxu0
        %v505 = vadd.f32 %v346, %v504
        %506 = vmatprep.mubr.bf16.mxu0 0
        %507 = vmatmul.mubr.bf16.gmra.mrb[0].mxu0 %v444
        %v508 = vpop.f32.mrb[0].mxu0
        %v509 = vadd.f32 %v342, %v508
        %v510 = vpop.f32.mrb[0].mxu0
        %v511 = vadd.f32 %v346, %v510
        %v512 = vpop.f32.mrb[0].mxu0
        %v513 = vadd.f32 %v342, %v512
        %v514 = vpop.f32.mrb[0].mxu0
        %v515 = vadd.f32 %v346, %v514
        %516 = vmatprep.mubr.bf16.mxu0 0
        %517 = vmatmul.mubr.bf16.gmra.mrb[0].mxu0 %v447
        %v518 = vpop.f32.mrb[0].mxu0
        %v519 = vadd.f32 %v342, %v518
        %v520 = vpop.f32.mrb[0].mxu0
        %v521 = vadd.f32 %v346, %v520
        %v522 = vpop.f32.mrb[0].mxu0
        %v523 = vadd.f32 %v342, %v522
        %v524 = vpop.f32.mrb[0].mxu0
        %v525 = vadd.f32 %v346, %v524
        %526 = vmatprep.mubr.bf16.mxu0 0
        %527 = vmatmul.mubr.bf16.gmra.mrb[0].mxu0 %v450
        %v528 = vpop.f32.mrb[0].mxu0
        %v529 = vadd.f32 %v342, %v528
        %v530 = vpop.f32.mrb[0].mxu0
        %v531 = vadd.f32 %v346, %v530
        %v532 = vpop.f32.mrb[0].mxu0
        %v533 = vadd.f32 %v342, %v532
        %v534 = vpop.f32.mrb[0].mxu0
        %v535 = vadd.f32 %v346, %v534
        %536 = vmatprep.mubr.bf16.mxu0 0
        %537 = vmatmul.mubr.bf16.gmra.mrb[0].mxu0 %v453
        %v538 = vpop.f32.mrb[0].mxu0
        %v539 = vadd.f32 %v342, %v538
        %v540 = vpop.f32.mrb[0].mxu0
        %v541 = vadd.f32 %v346, %v540
        %v542 = vpop.f32.mrb[0].mxu0
        %v543 = vadd.f32 %v342, %v542
        %v544 = vpop.f32.mrb[0].mxu0
        %v545 = vadd.f32 %v346, %v544
        %546 = vmatprep.mubr.bf16.mxu0 0
        %547 = vmatmul.mubr.bf16.gmra.mrb[0].mxu0 %v456
        %v548 = vpop.f32.mrb[0].mxu0
        %v549 = vadd.f32 %v342, %v548
        %v550 = vpop.f32.mrb[0].mxu0
        %v551 = vadd.f32 %v346, %v550
        %v552 = vpop.f32.mrb[0].mxu0
        %v553 = vadd.f32 %v342, %v552
        %v554 = vpop.f32.mrb[0].mxu0
        %v555 = vadd.f32 %v346, %v554
        %556 = vmatprep.mubr.bf16.mxu0 0
        %557 = vmatmul.mubr.bf16.gmra.mrb[0].mxu0 %v459
        %v558 = vpop.f32.mrb[0].mxu0
        %v559 = vadd.f32 %v342, %v558
        %v560 = vpop.f32.mrb[0].mxu0
        %v561 = vadd.f32 %v346, %v560
        %v562 = vpop.f32.mrb[0].mxu0
        %v563 = vadd.f32 %v342, %v562
        %v564 = vpop.f32.mrb[0].mxu0
        %v565 = vadd.f32 %v346, %v564
        %566 = vmatprep.mubr.bf16.mxu0 0
        %567 = vmatmul.mubr.bf16.gmra.mrb[0].mxu0 %v462
        %v568 = vpop.f32.mrb[0].mxu0
        %v569 = vadd.f32 %v342, %v568
        %v570 = vpop.f32.mrb[0].mxu0
        %v571 = vadd.f32 %v346, %v570
        %v572 = vpop.f32.mrb[0].mxu0
        %v573 = vadd.f32 %v342, %v572
        %v574 = vpop.f32.mrb[0].mxu0
        %v575 = vadd.f32 %v346, %v574
        %576 = vdwg.mxu0
        %577 = vmatprep.subr.bf16.mxu0 %v426
        %578 = vmatpush1.bf16.msra.mxu0 %v425
        %579 = vmatprep.subr.bf16.mxu0 %v430
        %580 = vmatpush1.bf16.msra.mxu0 %v429
        %581 = vmatprep.subr.bf16.mxu0 0
        %582 = vmatpush1.bf16.msra.mxu0 0
        %583 = vmatprep.subr.bf16.mxu0 0
        %584 = vmatpush1.bf16.msra.mxu0 0
        %585 = vmatprep.subr.bf16.mxu0 0
        %586 = vmatpush1.bf16.msra.mxu0 0
        %587 = vmatprep.subr.bf16.mxu0 0
        %588 = vmatpush1.bf16.msra.mxu0 0
        %589 = vmatprep.subr.bf16.mxu0 0
        %590 = vmatpush1.bf16.msra.mxu0 0
        %591 = vmatprep.subr.bf16.mxu0 0
        %592 = vmatpush1.bf16.msra.mxu0 0
        %593 = vmatprep.subr.bf16.mxu0 0
        %594 = vmatpush1.bf16.msra.mxu0 0
        %595 = vmatprep.subr.bf16.mxu0 0
        %596 = vmatpush1.bf16.msra.mxu0 0
        %597 = vmatprep.subr.bf16.mxu0 0
        %598 = vmatpush1.bf16.msra.mxu0 0
        %599 = vmatprep.subr.bf16.mxu0 0
        %600 = vmatpush1.bf16.msra.mxu0 0
        %601 = vmatprep.subr.bf16.mxu0 0
        %602 = vmatpush1.bf16.msra.mxu0 0
        %603 = vmatprep.subr.bf16.mxu0 0
        %604 = vmatpush1.bf16.msra.mxu0 0
        %605 = vmatprep.subr.bf16.mxu0 0
        %606 = vmatpush1.bf16.msra.mxu0 0
        %607 = vmatprep.subr.bf16.mxu0 0
        %608 = vmatpush1.bf16.msra.mxu0 0
        %609 = vmatprep.mubr.bf16.mxu0 0
        %610 = vmatmul.mubr.bf16.gmra.mrb[0].mxu0 %v441
        %v611 = vpop.f32.mrb[0].mxu0
        %v612 = vadd.f32 %v350, %v611
        %v613 = vpop.f32.mrb[0].mxu0
        %v614 = vadd.f32 %v354, %v613
        %v615 = vpop.f32.mrb[0].mxu0
        %v616 = vadd.f32 %v350, %v615
        %v617 = vpop.f32.mrb[0].mxu0
        %v618 = vadd.f32 %v354, %v617
        %619 = vmatprep.mubr.bf16.mxu0 0
        %620 = vmatmul.mubr.bf16.gmra.mrb[0].mxu0 %v444
        %v621 = vpop.f32.mrb[0].mxu0
        %v622 = vadd.f32 %v350, %v621
        %v623 = vpop.f32.mrb[0].mxu0
        %v624 = vadd.f32 %v354, %v623
        %v625 = vpop.f32.mrb[0].mxu0
        %v626 = vadd.f32 %v350, %v625
        %v627 = vpop.f32.mrb[0].mxu0
        %v628 = vadd.f32 %v354, %v627
        %629 = vmatprep.mubr.bf16.mxu0 0
        %630 = vmatmul.mubr.bf16.gmra.mrb[0].mxu0 %v447
        %v631 = vpop.f32.mrb[0].mxu0
        %v632 = vadd.f32 %v350, %v631
        %v633 = vpop.f32.mrb[0].mxu0
        %v634 = vadd.f32 %v354, %v633
        %v635 = vpop.f32.mrb[0].mxu0
        %v636 = vadd.f32 %v350, %v635
        %v637 = vpop.f32.mrb[0].mxu0
        %v638 = vadd.f32 %v354, %v637
        %639 = vmatprep.mubr.bf16.mxu0 0
        %640 = vmatmul.mubr.bf16.gmra.mrb[0].mxu0 %v450
        %v641 = vpop.f32.mrb[0].mxu0
        %v642 = vadd.f32 %v350, %v641
        %v643 = vpop.f32.mrb[0].mxu0
        %v644 = vadd.f32 %v354, %v643
        %v645 = vpop.f32.mrb[0].mxu0
        %v646 = vadd.f32 %v350, %v645
        %v647 = vpop.f32.mrb[0].mxu0
        %v648 = vadd.f32 %v354, %v647
        %649 = vmatprep.mubr.bf16.mxu0 0
        %650 = vmatmul.mubr.bf16.gmra.mrb[0].mxu0 %v453
        %v651 = vpop.f32.mrb[0].mxu0
        %v652 = vadd.f32 %v350, %v651
        %v653 = vpop.f32.mrb[0].mxu0
        %v654 = vadd.f32 %v354, %v653
        %v655 = vpop.f32.mrb[0].mxu0
        %v656 = vadd.f32 %v350, %v655
        %v657 = vpop.f32.mrb[0].mxu0
        %v658 = vadd.f32 %v354, %v657
        %659 = vmatprep.mubr.bf16.mxu0 0
        %660 = vmatmul.mubr.bf16.gmra.mrb[0].mxu0 %v456
        %v661 = vpop.f32.mrb[0].mxu0
        %v662 = vadd.f32 %v350, %v661
        %v663 = vpop.f32.mrb[0].mxu0
        %v664 = vadd.f32 %v354, %v663
        %v665 = vpop.f32.mrb[0].mxu0
        %v666 = vadd.f32 %v350, %v665
        %v667 = vpop.f32.mrb[0].mxu0
        %v668 = vadd.f32 %v354, %v667
        %669 = vmatprep.mubr.bf16.mxu0 0
        %670 = vmatmul.mubr.bf16.gmra.mrb[0].mxu0 %v459
        %v671 = vpop.f32.mrb[0].mxu0
        %v672 = vadd.f32 %v350, %v671
        %v673 = vpop.f32.mrb[0].mxu0
        %v674 = vadd.f32 %v354, %v673
        %v675 = vpop.f32.mrb[0].mxu0
        %v676 = vadd.f32 %v350, %v675
        %v677 = vpop.f32.mrb[0].mxu0
        %v678 = vadd.f32 %v354, %v677
        %679 = vmatprep.mubr.bf16.mxu0 0
        %680 = vmatmul.mubr.bf16.gmra.mrb[0].mxu0 %v462
        %v681 = vpop.f32.mrb[0].mxu0
        %v682 = vadd.f32 %v350, %v681
        %v683 = vpop.f32.mrb[0].mxu0
        %v684 = vadd.f32 %v354, %v683
        %v685 = vpop.f32.mrb[0].mxu0
        %v686 = vadd.f32 %v350, %v685
        %v687 = vpop.f32.mrb[0].mxu0
        %v688 = vadd.f32 %v354, %v687
        %689 = vdwg.mxu0
        %v690 = vmax.f32 %v499, 0.0
        %v691 = vmax.f32 %v501, 0.0
        %v692 = vmax.f32 %v612, 0.0
        %v693 = vmax.f32 %v614, 0.0
        %v694 = vmax.f32 %v503, 0.0
        %v695 = vmax.f32 %v505, 0.0
        %v696 = vmax.f32 %v616, 0.0
        %v697 = vmax.f32 %v618, 0.0
        %v698 = vmax.f32 %v509, 0.0
        %v699 = vmax.f32 %v511, 0.0
        %v700 = vmax.f32 %v622, 0.0
        %v701 = vmax.f32 %v624, 0.0
        %v702 = vmax.f32 %v513, 0.0
        %v703 = vmax.f32 %v515, 0.0
        %v704 = vmax.f32 %v626, 0.0
        %v705 = vmax.f32 %v628, 0.0
        %v706 = vmax.f32 %v519, 0.0
        %v707 = vmax.f32 %v521, 0.0
        %v708 = vmax.f32 %v632, 0.0
        %v709 = vmax.f32 %v634, 0.0
        %v710 = vmax.f32 %v523, 0.0
        %v711 = vmax.f32 %v525, 0.0
        %v712 = vmax.f32 %v636, 0.0
        %v713 = vmax.f32 %v638, 0.0
        %v714 = vmax.f32 %v529, 0.0
        %v715 = vmax.f32 %v531, 0.0
        %v716 = vmax.f32 %v642, 0.0
        %v717 = vmax.f32 %v644, 0.0
        %v718 = vmax.f32 %v533, 0.0
        %v719 = vmax.f32 %v535, 0.0
        %v720 = vmax.f32 %v646, 0.0
        %v721 = vmax.f32 %v648, 0.0
        %v722 = vmax.f32 %v539, 0.0
        %v723 = vmax.f32 %v541, 0.0
        %v724 = vmax.f32 %v652, 0.0
        %v725 = vmax.f32 %v654, 0.0
        %v726 = vmax.f32 %v543, 0.0
        %v727 = vmax.f32 %v545, 0.0
        %v728 = vmax.f32 %v656, 0.0
        %v729 = vmax.f32 %v658, 0.0
        %v730 = vmax.f32 %v549, 0.0
        %v731 = vmax.f32 %v551, 0.0
        %v732 = vmax.f32 %v662, 0.0
        %v733 = vmax.f32 %v664, 0.0
        %v734 = vmax.f32 %v553, 0.0
        %v735 = vmax.f32 %v555, 0.0
        %v736 = vmax.f32 %v666, 0.0
        %v737 = vmax.f32 %v668, 0.0
        %v738 = vmax.f32 %v559, 0.0
        %v739 = vmax.f32 %v561, 0.0
        %v740 = vmax.f32 %v672, 0.0
        %v741 = vmax.f32 %v674, 0.0
        %v742 = vmax.f32 %v563, 0.0
        %v743 = vmax.f32 %v565, 0.0
        %v744 = vmax.f32 %v676, 0.0
        %v745 = vmax.f32 %v678, 0.0
        %v746 = vmax.f32 %v569, 0.0
        %v747 = vmax.f32 %v571, 0.0
        %v748 = vmax.f32 %v682, 0.0
        %v749 = vmax.f32 %v684, 0.0
        %v750 = vmax.f32 %v573, 0.0
        %v751 = vmax.f32 %v575, 0.0
        %v752 = vmax.f32 %v686, 0.0
        %v753 = vmax.f32 %v688, 0.0
        %v754 = vpack.c.bf16 %v694, %v690
        %v755 = vpack.c.bf16 %v695, %v691
        %v756 = vpack.c.bf16 %v696, %v692
        %v757 = vpack.c.bf16 %v697, %v693
        %v758 = vpack.c.bf16 %v702, %v698
        %v759 = vpack.c.bf16 %v703, %v699
        %v760 = vpack.c.bf16 %v704, %v700
        %v761 = vpack.c.bf16 %v705, %v701
        %v762 = vpack.c.bf16 %v710, %v706
        %v763 = vpack.c.bf16 %v711, %v707
        %v764 = vpack.c.bf16 %v712, %v708
        %v765 = vpack.c.bf16 %v713, %v709
        %v766 = vpack.c.bf16 %v718, %v714
        %v767 = vpack.c.bf16 %v719, %v715
        %v768 = vpack.c.bf16 %v720, %v716
        %v769 = vpack.c.bf16 %v721, %v717
        %v770 = vpack.c.bf16 %v726, %v722
        %v771 = vpack.c.bf16 %v727, %v723
        %v772 = vpack.c.bf16 %v728, %v724
        %v773 = vpack.c.bf16 %v729, %v725
        %v774 = vpack.c.bf16 %v734, %v730
        %v775 = vpack.c.bf16 %v735, %v731
        %v776 = vpack.c.bf16 %v736, %v732
        %v777 = vpack.c.bf16 %v737, %v733
        %v778 = vpack.c.bf16 %v742, %v738
        %v779 = vpack.c.bf16 %v743, %v739
        %v780 = vpack.c.bf16 %v744, %v740
        %v781 = vpack.c.bf16 %v745, %v741
        %v782 = vpack.c.bf16 %v750, %v746
        %v783 = vpack.c.bf16 %v751, %v747
        %v784 = vpack.c.bf16 %v752, %v748
        %v785 = vpack.c.bf16 %v753, %v749
        %v786 = vld [vmem:[#allocation4] sm:$0xff]
        %v787 = vld [vmem:[#allocation4 + $0x8] sm:$0xff]
        %v788 = vld [vmem:[#allocation4 + $0x10] sm:$0xff]
        %v789 = vld [vmem:[#allocation4 + $0x18] sm:$0xff]
        %v790 = vld [vmem:[#allocation4 + $0x20] sm:$0xff]
        %v791 = vld [vmem:[#allocation4 + $0x28] sm:$0xff]
        %v792 = vld [vmem:[#allocation4 + $0x30] sm:$0xff]
        %v793 = vld [vmem:[#allocation4 + $0x38] sm:$0xff]
        %v794 = vld [vmem:[#allocation4 + $0x40] sm:$0xff]
        %v795 = vld [vmem:[#allocation4 + $0x48] sm:$0xff]
        %v796 = vld [vmem:[#allocation4 + $0x50] sm:$0xff]
        %v797 = vld [vmem:[#allocation4 + $0x58] sm:$0xff]
        %v798 = vld [vmem:[#allocation4 + $0x60] sm:$0xff]
        %v799 = vld [vmem:[#allocation4 + $0x68] sm:$0xff]
        %v800 = vld [vmem:[#allocation4 + $0x70] sm:$0xff]
        %v801 = vld [vmem:[#allocation4 + $0x78] sm:$0xff]
        %v802 = vld [vmem:[#allocation4 + $0x80] sm:$0xff]
        %v803 = vld [vmem:[#allocation4 + $0x88] sm:$0xff]
        %v804 = vld [vmem:[#allocation4 + $0x90] sm:$0xff]
        %v805 = vld [vmem:[#allocation4 + $0x98] sm:$0xff]
        %v806 = vld [vmem:[#allocation4 + $0xa0] sm:$0xff]
        %v807 = vld [vmem:[#allocation4 + $0xa8] sm:$0xff]
        %v808 = vld [vmem:[#allocation4 + $0xb0] sm:$0xff]
        %v809 = vld [vmem:[#allocation4 + $0xb8] sm:$0xff]
        %v810 = vld [vmem:[#allocation4 + $0xc0] sm:$0xff]
        %v811 = vld [vmem:[#allocation4 + $0xc8] sm:$0xff]
        %v812 = vld [vmem:[#allocation4 + $0xd0] sm:$0xff]
        %v813 = vld [vmem:[#allocation4 + $0xd8] sm:$0xff]
        %v814 = vld [vmem:[#allocation4 + $0xe0] sm:$0xff]
        %v815 = vld [vmem:[#allocation4 + $0xe8] sm:$0xff]
        %v816 = vld [vmem:[#allocation4 + $0xf0] sm:$0xff]
        %v817 = vld [vmem:[#allocation4 + $0xf8] sm:$0xff]
        %v818 = vld [vmem:[#allocation4 + $0x100] sm:$0xff]
        %v819 = vld [vmem:[#allocation4 + $0x108] sm:$0xff]
        %v820 = vld [vmem:[#allocation4 + $0x110] sm:$0xff]
        %v821 = vld [vmem:[#allocation4 + $0x118] sm:$0xff]
        %v822 = vld [vmem:[#allocation4 + $0x120] sm:$0xff]
        %v823 = vld [vmem:[#allocation4 + $0x128] sm:$0xff]
        %v824 = vld [vmem:[#allocation4 + $0x130] sm:$0xff]
        %v825 = vld [vmem:[#allocation4 + $0x138] sm:$0xff]
        %v826 = vld [vmem:[#allocation4 + $0x140] sm:$0xff]
        %v827 = vld [vmem:[#allocation4 + $0x148] sm:$0xff]
        %v828 = vld [vmem:[#allocation4 + $0x150] sm:$0xff]
        %v829 = vld [vmem:[#allocation4 + $0x158] sm:$0xff]
        %v830 = vld [vmem:[#allocation4 + $0x160] sm:$0xff]
        %v831 = vld [vmem:[#allocation4 + $0x168] sm:$0xff]
        %v832 = vld [vmem:[#allocation4 + $0x170] sm:$0xff]
        %v833 = vld [vmem:[#allocation4 + $0x178] sm:$0xff]
        %v834 = vld [vmem:[#allocation4 + $0x180] sm:$0xff]
        %v835 = vld [vmem:[#allocation4 + $0x188] sm:$0xff]
        %v836 = vld [vmem:[#allocation4 + $0x190] sm:$0xff]
        %v837 = vld [vmem:[#allocation4 + $0x198] sm:$0xff]
        %v838 = vld [vmem:[#allocation4 + $0x1a0] sm:$0xff]
        %v839 = vld [vmem:[#allocation4 + $0x1a8] sm:$0xff]
        %v840 = vld [vmem:[#allocation4 + $0x1b0] sm:$0xff]
        %v841 = vld [vmem:[#allocation4 + $0x1b8] sm:$0xff]
        %v842 = vld [vmem:[#allocation4 + $0x1c0] sm:$0xff]
        %v843 = vld [vmem:[#allocation4 + $0x1c8] sm:$0xff]
        %v844 = vld [vmem:[#allocation4 + $0x1d0] sm:$0xff]
        %v845 = vld [vmem:[#allocation4 + $0x1d8] sm:$0xff]
        %v846 = vld [vmem:[#allocation4 + $0x1e0] sm:$0xff]
        %v847 = vld [vmem:[#allocation4 + $0x1e8] sm:$0xff]
        %v848 = vld [vmem:[#allocation4 + $0x1f0] sm:$0xff]
        %v849 = vld [vmem:[#allocation4 + $0x1f8] sm:$0xff]
        %v850 = vld [vmem:[#allocation4 + $0x200] sm:$0xff]
        %v851 = vld [vmem:[#allocation4 + $0x208] sm:$0xff]
        %v852 = vld [vmem:[#allocation4 + $0x210] sm:$0xff]
        %v853 = vld [vmem:[#allocation4 + $0x218] sm:$0xff]
        %v854 = vld [vmem:[#allocation4 + $0x220] sm:$0xff]
        %v855 = vld [vmem:[#allocation4 + $0x228] sm:$0xff]
        %v856 = vld [vmem:[#allocation4 + $0x230] sm:$0xff]
        %v857 = vld [vmem:[#allocation4 + $0x238] sm:$0xff]
        %v858 = vld [vmem:[#allocation4 + $0x240] sm:$0xff]
        %v859 = vld [vmem:[#allocation4 + $0x248] sm:$0xff]
        %v860 = vld [vmem:[#allocation4 + $0x250] sm:$0xff]
        %v861 = vld [vmem:[#allocation4 + $0x258] sm:$0xff]
        %v862 = vld [vmem:[#allocation4 + $0x260] sm:$0xff]
        %v863 = vld [vmem:[#allocation4 + $0x268] sm:$0xff]
        %v864 = vld [vmem:[#allocation4 + $0x270] sm:$0xff]
        %v865 = vld [vmem:[#allocation4 + $0x278] sm:$0xff]
        %v866 = vld [vmem:[#allocation4 + $0x280] sm:$0xff]
        %v867 = vld [vmem:[#allocation4 + $0x288] sm:$0xff]
        %v868 = vld [vmem:[#allocation4 + $0x290] sm:$0xff]
        %v869 = vld [vmem:[#allocation4 + $0x298] sm:$0xff]
        %v870 = vld [vmem:[#allocation4 + $0x2a0] sm:$0xff]
        %v871 = vld [vmem:[#allocation4 + $0x2a8] sm:$0xff]
        %v872 = vld [vmem:[#allocation4 + $0x2b0] sm:$0xff]
        %v873 = vld [vmem:[#allocation4 + $0x2b8] sm:$0xff]
        %v874 = vld [vmem:[#allocation4 + $0x2c0] sm:$0xff]
        %v875 = vld [vmem:[#allocation4 + $0x2c8] sm:$0xff]
        %v876 = vld [vmem:[#allocation4 + $0x2d0] sm:$0xff]
        %v877 = vld [vmem:[#allocation4 + $0x2d8] sm:$0xff]
        %v878 = vld [vmem:[#allocation4 + $0x2e0] sm:$0xff]
        %v879 = vld [vmem:[#allocation4 + $0x2e8] sm:$0xff]
        %v880 = vld [vmem:[#allocation4 + $0x2f0] sm:$0xff]
        %v881 = vld [vmem:[#allocation4 + $0x2f8] sm:$0xff]
        %v882 = vld [vmem:[#allocation4 + $0x300] sm:$0xff]
        %v883 = vld [vmem:[#allocation4 + $0x308] sm:$0xff]
        %v884 = vld [vmem:[#allocation4 + $0x310] sm:$0xff]
        %v885 = vld [vmem:[#allocation4 + $0x318] sm:$0xff]
        %v886 = vld [vmem:[#allocation4 + $0x320] sm:$0xff]
        %v887 = vld [vmem:[#allocation4 + $0x328] sm:$0xff]
        %v888 = vld [vmem:[#allocation4 + $0x330] sm:$0xff]
        %v889 = vld [vmem:[#allocation4 + $0x338] sm:$0xff]
        %v890 = vld [vmem:[#allocation4 + $0x340] sm:$0xff]
        %v891 = vld [vmem:[#allocation4 + $0x348] sm:$0xff]
        %v892 = vld [vmem:[#allocation4 + $0x350] sm:$0xff]
        %v893 = vld [vmem:[#allocation4 + $0x358] sm:$0xff]
        %v894 = vld [vmem:[#allocation4 + $0x360] sm:$0xff]
        %v895 = vld [vmem:[#allocation4 + $0x368] sm:$0xff]
        %v896 = vld [vmem:[#allocation4 + $0x370] sm:$0xff]
        %v897 = vld [vmem:[#allocation4 + $0x378] sm:$0xff]
        %v898 = vld [vmem:[#allocation4 + $0x380] sm:$0xff]
        %v899 = vld [vmem:[#allocation4 + $0x388] sm:$0xff]
        %v900 = vld [vmem:[#allocation4 + $0x390] sm:$0xff]
        %v901 = vld [vmem:[#allocation4 + $0x398] sm:$0xff]
        %v902 = vld [vmem:[#allocation4 + $0x3a0] sm:$0xff]
        %v903 = vld [vmem:[#allocation4 + $0x3a8] sm:$0xff]
        %v904 = vld [vmem:[#allocation4 + $0x3b0] sm:$0xff]
        %v905 = vld [vmem:[#allocation4 + $0x3b8] sm:$0xff]
        %v906 = vld [vmem:[#allocation4 + $0x3c0] sm:$0xff]
        %v907 = vld [vmem:[#allocation4 + $0x3c8] sm:$0xff]
        %v908 = vld [vmem:[#allocation4 + $0x3d0] sm:$0xff]
        %v909 = vld [vmem:[#allocation4 + $0x3d8] sm:$0xff]
        %v910 = vld [vmem:[#allocation4 + $0x3e0] sm:$0xff]
        %v911 = vld [vmem:[#allocation4 + $0x3e8] sm:$0xff]
        %v912 = vld [vmem:[#allocation4 + $0x3f0] sm:$0xff]
        %v913 = vld [vmem:[#allocation4 + $0x3f8] sm:$0xff]
        %v914 = vld [vmem:[%s4] sm:$0xf]
        %v916 = vlaneseq
        %v917 = vshrl.u32 %v916, 7
        %v918 = vsub.s32 0, %v917
        %v919 = vrot.slane %v914, %v918
        %v920 = vlaneseq
        %v921 = vshrl.u32 %v920, 7
        %v922 = vsub.s32 1, %v921
        %v923 = vrot.slane %v914, %v922
        %v924 = vlaneseq
        %v925 = vshrl.u32 %v924, 7
        %v926 = vsub.s32 2, %v925
        %v927 = vrot.slane %v914, %v926
        %v928 = vlaneseq
        %v929 = vshrl.u32 %v928, 7
        %v930 = vsub.s32 3, %v929
        %v931 = vrot.slane %v914, %v930
        %v1064 = vunpack.c.l.b16 %v786
        %v1065 = vunpack.c.h.b16 %v786
        %v1066 = vunpack.c.l.b16 %v787
        %v1067 = vunpack.c.h.b16 %v787
        %v1068 = vunpack.c.l.b16 %v788
        %v1069 = vunpack.c.h.b16 %v788
        %v1070 = vunpack.c.l.b16 %v789
        %v1071 = vunpack.c.h.b16 %v789
        %v1072 = vunpack.c.l.b16 %v790
        %v1073 = vunpack.c.h.b16 %v790
        %v1074 = vunpack.c.l.b16 %v791
        %v1075 = vunpack.c.h.b16 %v791
        %v1076 = vunpack.c.l.b16 %v792
        %v1077 = vunpack.c.h.b16 %v792
        %v1078 = vunpack.c.l.b16 %v793
        %v1079 = vunpack.c.h.b16 %v793
        %v1080 = vunpack.c.l.b16 %v794
        %v1081 = vunpack.c.h.b16 %v794
        %v1082 = vunpack.c.l.b16 %v795
        %v1083 = vunpack.c.h.b16 %v795
        %v1084 = vunpack.c.l.b16 %v796
        %v1085 = vunpack.c.h.b16 %v796
        %v1086 = vunpack.c.l.b16 %v797
        %v1087 = vunpack.c.h.b16 %v797
        %v1088 = vunpack.c.l.b16 %v798
        %v1089 = vunpack.c.h.b16 %v798
        %v1090 = vunpack.c.l.b16 %v799
        %v1091 = vunpack.c.h.b16 %v799
        %v1092 = vunpack.c.l.b16 %v800
        %v1093 = vunpack.c.h.b16 %v800
        %v1094 = vunpack.c.l.b16 %v801
        %v1095 = vunpack.c.h.b16 %v801
        %v1096 = vunpack.c.l.b16 %v802
        %v1097 = vunpack.c.h.b16 %v802
        %v1098 = vunpack.c.l.b16 %v803
        %v1099 = vunpack.c.h.b16 %v803
        %v1100 = vunpack.c.l.b16 %v804
        %v1101 = vunpack.c.h.b16 %v804
        %v1102 = vunpack.c.l.b16 %v805
        %v1103 = vunpack.c.h.b16 %v805
        %v1104 = vunpack.c.l.b16 %v806
        %v1105 = vunpack.c.h.b16 %v806
        %v1106 = vunpack.c.l.b16 %v807
        %v1107 = vunpack.c.h.b16 %v807
        %v1108 = vunpack.c.l.b16 %v808
        %v1109 = vunpack.c.h.b16 %v808
        %v1110 = vunpack.c.l.b16 %v809
        %v1111 = vunpack.c.h.b16 %v809
        %v1112 = vunpack.c.l.b16 %v810
        %v1113 = vunpack.c.h.b16 %v810
        %v1114 = vunpack.c.l.b16 %v811
        %v1115 = vunpack.c.h.b16 %v811
        %v1116 = vunpack.c.l.b16 %v812
        %v1117 = vunpack.c.h.b16 %v812
        %v1118 = vunpack.c.l.b16 %v813
        %v1119 = vunpack.c.h.b16 %v813
        %v1120 = vunpack.c.l.b16 %v814
        %v1121 = vunpack.c.h.b16 %v814
        %v1122 = vunpack.c.l.b16 %v815
        %v1123 = vunpack.c.h.b16 %v815
        %v1124 = vunpack.c.l.b16 %v816
        %v1125 = vunpack.c.h.b16 %v816
        %v1126 = vunpack.c.l.b16 %v817
        %v1127 = vunpack.c.h.b16 %v817
        %v1128 = vunpack.c.l.b16 %v818
        %v1129 = vunpack.c.h.b16 %v818
        %v1130 = vunpack.c.l.b16 %v819
        %v1131 = vunpack.c.h.b16 %v819
        %v1132 = vunpack.c.l.b16 %v820
        %v1133 = vunpack.c.h.b16 %v820
        %v1134 = vunpack.c.l.b16 %v821
        %v1135 = vunpack.c.h.b16 %v821
        %v1136 = vunpack.c.l.b16 %v822
        %v1137 = vunpack.c.h.b16 %v822
        %v1138 = vunpack.c.l.b16 %v823
        %v1139 = vunpack.c.h.b16 %v823
        %v1140 = vunpack.c.l.b16 %v824
        %v1141 = vunpack.c.h.b16 %v824
        %v1142 = vunpack.c.l.b16 %v825
        %v1143 = vunpack.c.h.b16 %v825
        %v1144 = vunpack.c.l.b16 %v826
        %v1145 = vunpack.c.h.b16 %v826
        %v1146 = vunpack.c.l.b16 %v827
        %v1147 = vunpack.c.h.b16 %v827
        %v1148 = vunpack.c.l.b16 %v828
        %v1149 = vunpack.c.h.b16 %v828
        %v1150 = vunpack.c.l.b16 %v829
        %v1151 = vunpack.c.h.b16 %v829
        %v1152 = vunpack.c.l.b16 %v830
        %v1153 = vunpack.c.h.b16 %v830
        %v1154 = vunpack.c.l.b16 %v831
        %v1155 = vunpack.c.h.b16 %v831
        %v1156 = vunpack.c.l.b16 %v832
        %v1157 = vunpack.c.h.b16 %v832
        %v1158 = vunpack.c.l.b16 %v833
        %v1159 = vunpack.c.h.b16 %v833
        %v1160 = vunpack.c.l.b16 %v834
        %v1161 = vunpack.c.h.b16 %v834
        %v1162 = vunpack.c.l.b16 %v835
        %v1163 = vunpack.c.h.b16 %v835
        %v1164 = vunpack.c.l.b16 %v836
        %v1165 = vunpack.c.h.b16 %v836
        %v1166 = vunpack.c.l.b16 %v837
        %v1167 = vunpack.c.h.b16 %v837
        %v1168 = vunpack.c.l.b16 %v838
        %v1169 = vunpack.c.h.b16 %v838
        %v1170 = vunpack.c.l.b16 %v839
        %v1171 = vunpack.c.h.b16 %v839
        %v1172 = vunpack.c.l.b16 %v840
        %v1173 = vunpack.c.h.b16 %v840
        %v1174 = vunpack.c.l.b16 %v841
        %v1175 = vunpack.c.h.b16 %v841
        %v1176 = vunpack.c.l.b16 %v842
        %v1177 = vunpack.c.h.b16 %v842
        %v1178 = vunpack.c.l.b16 %v843
        %v1179 = vunpack.c.h.b16 %v843
        %v1180 = vunpack.c.l.b16 %v844
        %v1181 = vunpack.c.h.b16 %v844
        %v1182 = vunpack.c.l.b16 %v845
        %v1183 = vunpack.c.h.b16 %v845
        %v1184 = vunpack.c.l.b16 %v846
        %v1185 = vunpack.c.h.b16 %v846
        %v1186 = vunpack.c.l.b16 %v847
        %v1187 = vunpack.c.h.b16 %v847
        %v1188 = vunpack.c.l.b16 %v848
        %v1189 = vunpack.c.h.b16 %v848
        %v1190 = vunpack.c.l.b16 %v849
        %v1191 = vunpack.c.h.b16 %v849
        %v1192 = vunpack.c.l.b16 %v850
        %v1193 = vunpack.c.h.b16 %v850
        %v1194 = vunpack.c.l.b16 %v851
        %v1195 = vunpack.c.h.b16 %v851
        %v1196 = vunpack.c.l.b16 %v852
        %v1197 = vunpack.c.h.b16 %v852
        %v1198 = vunpack.c.l.b16 %v853
        %v1199 = vunpack.c.h.b16 %v853
        %v1200 = vunpack.c.l.b16 %v854
        %v1201 = vunpack.c.h.b16 %v854
        %v1202 = vunpack.c.l.b16 %v855
        %v1203 = vunpack.c.h.b16 %v855
        %v1204 = vunpack.c.l.b16 %v856
        %v1205 = vunpack.c.h.b16 %v856
        %v1206 = vunpack.c.l.b16 %v857
        %v1207 = vunpack.c.h.b16 %v857
        %v1208 = vunpack.c.l.b16 %v858
        %v1209 = vunpack.c.h.b16 %v858
        %v1210 = vunpack.c.l.b16 %v859
        %v1211 = vunpack.c.h.b16 %v859
        %v1212 = vunpack.c.l.b16 %v860
        %v1213 = vunpack.c.h.b16 %v860
        %v1214 = vunpack.c.l.b16 %v861
        %v1215 = vunpack.c.h.b16 %v861
        %v1216 = vunpack.c.l.b16 %v862
        %v1217 = vunpack.c.h.b16 %v862
        %v1218 = vunpack.c.l.b16 %v863
        %v1219 = vunpack.c.h.b16 %v863
        %v1220 = vunpack.c.l.b16 %v864
        %v1221 = vunpack.c.h.b16 %v864
        %v1222 = vunpack.c.l.b16 %v865
        %v1223 = vunpack.c.h.b16 %v865
        %v1224 = vunpack.c.l.b16 %v866
        %v1225 = vunpack.c.h.b16 %v866
        %v1226 = vunpack.c.l.b16 %v867
        %v1227 = vunpack.c.h.b16 %v867
        %v1228 = vunpack.c.l.b16 %v868
        %v1229 = vunpack.c.h.b16 %v868
        %v1230 = vunpack.c.l.b16 %v869
        %v1231 = vunpack.c.h.b16 %v869
        %v1232 = vunpack.c.l.b16 %v870
        %v1233 = vunpack.c.h.b16 %v870
        %v1234 = vunpack.c.l.b16 %v871
        %v1235 = vunpack.c.h.b16 %v871
        %v1236 = vunpack.c.l.b16 %v872
        %v1237 = vunpack.c.h.b16 %v872
        %v1238 = vunpack.c.l.b16 %v873
        %v1239 = vunpack.c.h.b16 %v873
        %v1240 = vunpack.c.l.b16 %v874
        %v1241 = vunpack.c.h.b16 %v874
        %v1242 = vunpack.c.l.b16 %v875
        %v1243 = vunpack.c.h.b16 %v875
        %v1244 = vunpack.c.l.b16 %v876
        %v1245 = vunpack.c.h.b16 %v876
        %v1246 = vunpack.c.l.b16 %v877
        %v1247 = vunpack.c.h.b16 %v877
        %v1248 = vunpack.c.l.b16 %v878
        %v1249 = vunpack.c.h.b16 %v878
        %v1250 = vunpack.c.l.b16 %v879
        %v1251 = vunpack.c.h.b16 %v879
        %v1252 = vunpack.c.l.b16 %v880
        %v1253 = vunpack.c.h.b16 %v880
        %v1254 = vunpack.c.l.b16 %v881
        %v1255 = vunpack.c.h.b16 %v881
        %v1256 = vunpack.c.l.b16 %v882
        %v1257 = vunpack.c.h.b16 %v882
        %v1258 = vunpack.c.l.b16 %v883
        %v1259 = vunpack.c.h.b16 %v883
        %v1260 = vunpack.c.l.b16 %v884
        %v1261 = vunpack.c.h.b16 %v884
        %v1262 = vunpack.c.l.b16 %v885
        %v1263 = vunpack.c.h.b16 %v885
        %v1264 = vunpack.c.l.b16 %v886
        %v1265 = vunpack.c.h.b16 %v886
        %v1266 = vunpack.c.l.b16 %v887
        %v1267 = vunpack.c.h.b16 %v887
        %v1268 = vunpack.c.l.b16 %v888
        %v1269 = vunpack.c.h.b16 %v888
        %v1270 = vunpack.c.l.b16 %v889
        %v1271 = vunpack.c.h.b16 %v889
        %v1272 = vunpack.c.l.b16 %v890
        %v1273 = vunpack.c.h.b16 %v890
        %v1274 = vunpack.c.l.b16 %v891
        %v1275 = vunpack.c.h.b16 %v891
        %v1276 = vunpack.c.l.b16 %v892
        %v1277 = vunpack.c.h.b16 %v892
        %v1278 = vunpack.c.l.b16 %v893
        %v1279 = vunpack.c.h.b16 %v893
        %v1280 = vunpack.c.l.b16 %v894
        %v1281 = vunpack.c.h.b16 %v894
        %v1282 = vunpack.c.l.b16 %v895
        %v1283 = vunpack.c.h.b16 %v895
        %v1284 = vunpack.c.l.b16 %v896
        %v1285 = vunpack.c.h.b16 %v896
        %v1286 = vunpack.c.l.b16 %v897
        %v1287 = vunpack.c.h.b16 %v897
        %v1288 = vunpack.c.l.b16 %v898
        %v1289 = vunpack.c.h.b16 %v898
        %v1290 = vunpack.c.l.b16 %v899
        %v1291 = vunpack.c.h.b16 %v899
        %v1292 = vunpack.c.l.b16 %v900
        %v1293 = vunpack.c.h.b16 %v900
        %v1294 = vunpack.c.l.b16 %v901
        %v1295 = vunpack.c.h.b16 %v901
        %v1296 = vunpack.c.l.b16 %v902
        %v1297 = vunpack.c.h.b16 %v902
        %v1298 = vunpack.c.l.b16 %v903
        %v1299 = vunpack.c.h.b16 %v903
        %v1300 = vunpack.c.l.b16 %v904
        %v1301 = vunpack.c.h.b16 %v904
        %v1302 = vunpack.c.l.b16 %v905
        %v1303 = vunpack.c.h.b16 %v905
        %v1304 = vunpack.c.l.b16 %v906
        %v1305 = vunpack.c.h.b16 %v906
        %v1306 = vunpack.c.l.b16 %v907
        %v1307 = vunpack.c.h.b16 %v907
        %v1308 = vunpack.c.l.b16 %v908
        %v1309 = vunpack.c.h.b16 %v908
        %v1310 = vunpack.c.l.b16 %v909
        %v1311 = vunpack.c.h.b16 %v909
        %v1312 = vunpack.c.l.b16 %v910
        %v1313 = vunpack.c.h.b16 %v910
        %v1314 = vunpack.c.l.b16 %v911
        %v1315 = vunpack.c.h.b16 %v911
        %v1316 = vunpack.c.l.b16 %v912
        %v1317 = vunpack.c.h.b16 %v912
        %v1318 = vunpack.c.l.b16 %v913
        %v1319 = vunpack.c.h.b16 %v913
        %v1320 = vpack.c.b16 %v1068, %v1064
        %v1321 = vpack.c.b16 %v1069, %v1065
        %v1322 = vpack.c.b16 %v1070, %v1066
        %v1323 = vpack.c.b16 %v1071, %v1067
        %v1324 = vpack.c.b16 %v1076, %v1072
        %v1325 = vpack.c.b16 %v1077, %v1073
        %v1326 = vpack.c.b16 %v1078, %v1074
        %v1327 = vpack.c.b16 %v1079, %v1075
        %v1328 = vpack.c.b16 %v1084, %v1080
        %v1329 = vpack.c.b16 %v1085, %v1081
        %v1330 = vpack.c.b16 %v1086, %v1082
        %v1331 = vpack.c.b16 %v1087, %v1083
        %v1332 = vpack.c.b16 %v1092, %v1088
        %v1333 = vpack.c.b16 %v1093, %v1089
        %v1334 = vpack.c.b16 %v1094, %v1090
        %v1335 = vpack.c.b16 %v1095, %v1091
        %v1336 = vpack.c.b16 %v1100, %v1096
        %v1337 = vpack.c.b16 %v1101, %v1097
        %v1338 = vpack.c.b16 %v1102, %v1098
        %v1339 = vpack.c.b16 %v1103, %v1099
        %v1340 = vpack.c.b16 %v1108, %v1104
        %v1341 = vpack.c.b16 %v1109, %v1105
        %v1342 = vpack.c.b16 %v1110, %v1106
        %v1343 = vpack.c.b16 %v1111, %v1107
        %v1344 = vpack.c.b16 %v1116, %v1112
        %v1345 = vpack.c.b16 %v1117, %v1113
        %v1346 = vpack.c.b16 %v1118, %v1114
        %v1347 = vpack.c.b16 %v1119, %v1115
        %v1348 = vpack.c.b16 %v1124, %v1120
        %v1349 = vpack.c.b16 %v1125, %v1121
        %v1350 = vpack.c.b16 %v1126, %v1122
        %v1351 = vpack.c.b16 %v1127, %v1123
        %v1352 = vpack.c.b16 %v1132, %v1128
        %v1353 = vpack.c.b16 %v1133, %v1129
        %v1354 = vpack.c.b16 %v1134, %v1130
        %v1355 = vpack.c.b16 %v1135, %v1131
        %v1356 = vpack.c.b16 %v1140, %v1136
        %v1357 = vpack.c.b16 %v1141, %v1137
        %v1358 = vpack.c.b16 %v1142, %v1138
        %v1359 = vpack.c.b16 %v1143, %v1139
        %v1360 = vpack.c.b16 %v1148, %v1144
        %v1361 = vpack.c.b16 %v1149, %v1145
        %v1362 = vpack.c.b16 %v1150, %v1146
        %v1363 = vpack.c.b16 %v1151, %v1147
        %v1364 = vpack.c.b16 %v1156, %v1152
        %v1365 = vpack.c.b16 %v1157, %v1153
        %v1366 = vpack.c.b16 %v1158, %v1154
        %v1367 = vpack.c.b16 %v1159, %v1155
        %v1368 = vpack.c.b16 %v1164, %v1160
        %v1369 = vpack.c.b16 %v1165, %v1161
        %v1370 = vpack.c.b16 %v1166, %v1162
        %v1371 = vpack.c.b16 %v1167, %v1163
        %v1372 = vpack.c.b16 %v1172, %v1168
        %v1373 = vpack.c.b16 %v1173, %v1169
        %v1374 = vpack.c.b16 %v1174, %v1170
        %v1375 = vpack.c.b16 %v1175, %v1171
        %v1376 = vpack.c.b16 %v1180, %v1176
        %v1377 = vpack.c.b16 %v1181, %v1177
        %v1378 = vpack.c.b16 %v1182, %v1178
        %v1379 = vpack.c.b16 %v1183, %v1179
        %v1380 = vpack.c.b16 %v1188, %v1184
        %v1381 = vpack.c.b16 %v1189, %v1185
        %v1382 = vpack.c.b16 %v1190, %v1186
        %v1383 = vpack.c.b16 %v1191, %v1187
        %v1384 = vpack.c.b16 %v1196, %v1192
        %v1385 = vpack.c.b16 %v1197, %v1193
        %v1386 = vpack.c.b16 %v1198, %v1194
        %v1387 = vpack.c.b16 %v1199, %v1195
        %v1388 = vpack.c.b16 %v1204, %v1200
        %v1389 = vpack.c.b16 %v1205, %v1201
        %v1390 = vpack.c.b16 %v1206, %v1202
        %v1391 = vpack.c.b16 %v1207, %v1203
        %v1392 = vpack.c.b16 %v1212, %v1208
        %v1393 = vpack.c.b16 %v1213, %v1209
        %v1394 = vpack.c.b16 %v1214, %v1210
        %v1395 = vpack.c.b16 %v1215, %v1211
        %v1396 = vpack.c.b16 %v1220, %v1216
        %v1397 = vpack.c.b16 %v1221, %v1217
        %v1398 = vpack.c.b16 %v1222, %v1218
        %v1399 = vpack.c.b16 %v1223, %v1219
        %v1400 = vpack.c.b16 %v1228, %v1224
        %v1401 = vpack.c.b16 %v1229, %v1225
        %v1402 = vpack.c.b16 %v1230, %v1226
        %v1403 = vpack.c.b16 %v1231, %v1227
        %v1404 = vpack.c.b16 %v1236, %v1232
        %v1405 = vpack.c.b16 %v1237, %v1233
        %v1406 = vpack.c.b16 %v1238, %v1234
        %v1407 = vpack.c.b16 %v1239, %v1235
        %v1408 = vpack.c.b16 %v1244, %v1240
        %v1409 = vpack.c.b16 %v1245, %v1241
        %v1410 = vpack.c.b16 %v1246, %v1242
        %v1411 = vpack.c.b16 %v1247, %v1243
        %v1412 = vpack.c.b16 %v1252, %v1248
        %v1413 = vpack.c.b16 %v1253, %v1249
        %v1414 = vpack.c.b16 %v1254, %v1250
        %v1415 = vpack.c.b16 %v1255, %v1251
        %v1416 = vpack.c.b16 %v1260, %v1256
        %v1417 = vpack.c.b16 %v1261, %v1257
        %v1418 = vpack.c.b16 %v1262, %v1258
        %v1419 = vpack.c.b16 %v1263, %v1259
        %v1420 = vpack.c.b16 %v1268, %v1264
        %v1421 = vpack.c.b16 %v1269, %v1265
        %v1422 = vpack.c.b16 %v1270, %v1266
        %v1423 = vpack.c.b16 %v1271, %v1267
        %v1424 = vpack.c.b16 %v1276, %v1272
        %v1425 = vpack.c.b16 %v1277, %v1273
        %v1426 = vpack.c.b16 %v1278, %v1274
        %v1427 = vpack.c.b16 %v1279, %v1275
        %v1428 = vpack.c.b16 %v1284, %v1280
        %v1429 = vpack.c.b16 %v1285, %v1281
        %v1430 = vpack.c.b16 %v1286, %v1282
        %v1431 = vpack.c.b16 %v1287, %v1283
        %v1432 = vpack.c.b16 %v1292, %v1288
        %v1433 = vpack.c.b16 %v1293, %v1289
        %v1434 = vpack.c.b16 %v1294, %v1290
        %v1435 = vpack.c.b16 %v1295, %v1291
        %v1436 = vpack.c.b16 %v1300, %v1296
        %v1437 = vpack.c.b16 %v1301, %v1297
        %v1438 = vpack.c.b16 %v1302, %v1298
        %v1439 = vpack.c.b16 %v1303, %v1299
        %v1440 = vpack.c.b16 %v1308, %v1304
        %v1441 = vpack.c.b16 %v1309, %v1305
        %v1442 = vpack.c.b16 %v1310, %v1306
        %v1443 = vpack.c.b16 %v1311, %v1307
        %v1444 = vpack.c.b16 %v1316, %v1312
        %v1445 = vpack.c.b16 %v1317, %v1313
        %v1446 = vpack.c.b16 %v1318, %v1314
        %v1447 = vpack.c.b16 %v1319, %v1315
        %1576 = vmatprep.subr.bf16.mxu0 %v1321
        %1577 = vmatpush1.bf16.msra.mxu0 %v1320
        %1578 = vmatprep.subr.bf16.mxu0 %v1325
        %1579 = vmatpush1.bf16.msra.mxu0 %v1324
        %1580 = vmatprep.subr.bf16.mxu0 %v1329
        %1581 = vmatpush1.bf16.msra.mxu0 %v1328
        %1582 = vmatprep.subr.bf16.mxu0 %v1333
        %1583 = vmatpush1.bf16.msra.mxu0 %v1332
        %1584 = vmatprep.subr.bf16.mxu0 %v1337
        %1585 = vmatpush1.bf16.msra.mxu0 %v1336
        %1586 = vmatprep.subr.bf16.mxu0 %v1341
        %1587 = vmatpush1.bf16.msra.mxu0 %v1340
        %1588 = vmatprep.subr.bf16.mxu0 %v1345
        %1589 = vmatpush1.bf16.msra.mxu0 %v1344
        %1590 = vmatprep.subr.bf16.mxu0 %v1349
        %1591 = vmatpush1.bf16.msra.mxu0 %v1348
        %1592 = vmatprep.subr.bf16.mxu0 %v1353
        %1593 = vmatpush1.bf16.msra.mxu0 %v1352
        %1594 = vmatprep.subr.bf16.mxu0 %v1357
        %1595 = vmatpush1.bf16.msra.mxu0 %v1356
        %1596 = vmatprep.subr.bf16.mxu0 %v1361
        %1597 = vmatpush1.bf16.msra.mxu0 %v1360
        %1598 = vmatprep.subr.bf16.mxu0 %v1365
        %1599 = vmatpush1.bf16.msra.mxu0 %v1364
        %1600 = vmatprep.subr.bf16.mxu0 %v1369
        %1601 = vmatpush1.bf16.msra.mxu0 %v1368
        %1602 = vmatprep.subr.bf16.mxu0 %v1373
        %1603 = vmatpush1.bf16.msra.mxu0 %v1372
        %1604 = vmatprep.subr.bf16.mxu0 %v1377
        %1605 = vmatpush1.bf16.msra.mxu0 %v1376
        %1606 = vmatprep.subr.bf16.mxu0 %v1381
        %1607 = vmatpush1.bf16.msra.mxu0 %v1380
        %1608 = vmatprep.mubr.bf16.mxu0 %v755
        %1609 = vmatmul.mubr.bf16.gmra.mrb[0].mxu0 %v754
        %v1610 = vpop.f32.mrb[0].mxu0
        %v1611 = vadd.f32 %v919, %v1610
        %v1612 = vpop.f32.mrb[0].mxu0
        %v1613 = vadd.f32 %v923, %v1612
        %v1614 = vpop.f32.mrb[0].mxu0
        %v1615 = vadd.f32 %v919, %v1614
        %v1616 = vpop.f32.mrb[0].mxu0
        %v1617 = vadd.f32 %v923, %v1616
        %1618 = vmatprep.mubr.bf16.mxu0 %v759
        %1619 = vmatmul.mubr.bf16.gmra.mrb[0].mxu0 %v758
        %v1620 = vpop.f32.mrb[0].mxu0
        %v1621 = vadd.f32 %v919, %v1620
        %v1622 = vpop.f32.mrb[0].mxu0
        %v1623 = vadd.f32 %v923, %v1622
        %v1624 = vpop.f32.mrb[0].mxu0
        %v1625 = vadd.f32 %v919, %v1624
        %v1626 = vpop.f32.mrb[0].mxu0
        %v1627 = vadd.f32 %v923, %v1626
        %1628 = vmatprep.mubr.bf16.mxu0 %v763
        %1629 = vmatmul.mubr.bf16.gmra.mrb[0].mxu0 %v762
        %v1630 = vpop.f32.mrb[0].mxu0
        %v1631 = vadd.f32 %v919, %v1630
        %v1632 = vpop.f32.mrb[0].mxu0
        %v1633 = vadd.f32 %v923, %v1632
        %v1634 = vpop.f32.mrb[0].mxu0
        %v1635 = vadd.f32 %v919, %v1634
        %v1636 = vpop.f32.mrb[0].mxu0
        %v1637 = vadd.f32 %v923, %v1636
        %1638 = vmatprep.mubr.bf16.mxu0 %v767
        %1639 = vmatmul.mubr.bf16.gmra.mrb[0].mxu0 %v766
        %v1640 = vpop.f32.mrb[0].mxu0
        %v1641 = vadd.f32 %v919, %v1640
        %v1642 = vpop.f32.mrb[0].mxu0
        %v1643 = vadd.f32 %v923, %v1642
        %v1644 = vpop.f32.mrb[0].mxu0
        %v1645 = vadd.f32 %v919, %v1644
        %v1646 = vpop.f32.mrb[0].mxu0
        %v1647 = vadd.f32 %v923, %v1646
        %1648 = vmatprep.mubr.bf16.mxu0 %v771
        %1649 = vmatmul.mubr.bf16.gmra.mrb[0].mxu0 %v770
        %v1650 = vpop.f32.mrb[0].mxu0
        %v1651 = vadd.f32 %v919, %v1650
        %v1652 = vpop.f32.mrb[0].mxu0
        %v1653 = vadd.f32 %v923, %v1652
        %v1654 = vpop.f32.mrb[0].mxu0
        %v1655 = vadd.f32 %v919, %v1654
        %v1656 = vpop.f32.mrb[0].mxu0
        %v1657 = vadd.f32 %v923, %v1656
        %1658 = vmatprep.mubr.bf16.mxu0 %v775
        %1659 = vmatmul.mubr.bf16.gmra.mrb[0].mxu0 %v774
        %v1660 = vpop.f32.mrb[0].mxu0
        %v1661 = vadd.f32 %v919, %v1660
        %v1662 = vpop.f32.mrb[0].mxu0
        %v1663 = vadd.f32 %v923, %v1662
        %v1664 = vpop.f32.mrb[0].mxu0
        %v1665 = vadd.f32 %v919, %v1664
        %v1666 = vpop.f32.mrb[0].mxu0
        %v1667 = vadd.f32 %v923, %v1666
        %1668 = vmatprep.mubr.bf16.mxu0 %v779
        %1669 = vmatmul.mubr.bf16.gmra.mrb[0].mxu0 %v778
        %v1670 = vpop.f32.mrb[0].mxu0
        %v1671 = vadd.f32 %v919, %v1670
        %v1672 = vpop.f32.mrb[0].mxu0
        %v1673 = vadd.f32 %v923, %v1672
        %v1674 = vpop.f32.mrb[0].mxu0
        %v1675 = vadd.f32 %v919, %v1674
        %v1676 = vpop.f32.mrb[0].mxu0
        %v1677 = vadd.f32 %v923, %v1676
        %1678 = vmatprep.mubr.bf16.mxu0 %v783
        %1679 = vmatmul.mubr.bf16.gmra.mrb[0].mxu0 %v782
        %v1680 = vpop.f32.mrb[0].mxu0
        %v1681 = vadd.f32 %v919, %v1680
        %v1682 = vpop.f32.mrb[0].mxu0
        %v1683 = vadd.f32 %v923, %v1682
        %v1684 = vpop.f32.mrb[0].mxu0
        %v1685 = vadd.f32 %v919, %v1684
        %v1686 = vpop.f32.mrb[0].mxu0
        %v1687 = vadd.f32 %v923, %v1686
        %1688 = vdwg.mxu0
        %1689 = vmatprep.subr.bf16.mxu0 %v1385
        %1690 = vmatpush1.bf16.msra.mxu0 %v1384
        %1691 = vmatprep.subr.bf16.mxu0 %v1389
        %1692 = vmatpush1.bf16.msra.mxu0 %v1388
        %1693 = vmatprep.subr.bf16.mxu0 %v1393
        %1694 = vmatpush1.bf16.msra.mxu0 %v1392
        %1695 = vmatprep.subr.bf16.mxu0 %v1397
        %1696 = vmatpush1.bf16.msra.mxu0 %v1396
        %1697 = vmatprep.subr.bf16.mxu0 %v1401
        %1698 = vmatpush1.bf16.msra.mxu0 %v1400
        %1699 = vmatprep.subr.bf16.mxu0 %v1405
        %1700 = vmatpush1.bf16.msra.mxu0 %v1404
        %1701 = vmatprep.subr.bf16.mxu0 %v1409
        %1702 = vmatpush1.bf16.msra.mxu0 %v1408
        %1703 = vmatprep.subr.bf16.mxu0 %v1413
        %1704 = vmatpush1.bf16.msra.mxu0 %v1412
        %1705 = vmatprep.subr.bf16.mxu0 %v1417
        %1706 = vmatpush1.bf16.msra.mxu0 %v1416
        %1707 = vmatprep.subr.bf16.mxu0 %v1421
        %1708 = vmatpush1.bf16.msra.mxu0 %v1420
        %1709 = vmatprep.subr.bf16.mxu0 %v1425
        %1710 = vmatpush1.bf16.msra.mxu0 %v1424
        %1711 = vmatprep.subr.bf16.mxu0 %v1429
        %1712 = vmatpush1.bf16.msra.mxu0 %v1428
        %1713 = vmatprep.subr.bf16.mxu0 %v1433
        %1714 = vmatpush1.bf16.msra.mxu0 %v1432
        %1715 = vmatprep.subr.bf16.mxu0 %v1437
        %1716 = vmatpush1.bf16.msra.mxu0 %v1436
        %1717 = vmatprep.subr.bf16.mxu0 %v1441
        %1718 = vmatpush1.bf16.msra.mxu0 %v1440
        %1719 = vmatprep.subr.bf16.mxu0 %v1445
        %1720 = vmatpush1.bf16.msra.mxu0 %v1444
        %1721 = vmatprep.mubr.bf16.mxu0 %v757
        %1722 = vmatmul.mubr.bf16.gmra.mrb[0].mxu0 %v756
        %v1723 = vpop.f32.mrb[0].mxu0
        %v1724 = vadd.f32 %v1611, %v1723
        %v1725 = vpop.f32.mrb[0].mxu0
        %v1726 = vadd.f32 %v1613, %v1725
        %v1727 = vpop.f32.mrb[0].mxu0
        %v1728 = vadd.f32 %v1615, %v1727
        %v1729 = vpop.f32.mrb[0].mxu0
        %v1730 = vadd.f32 %v1617, %v1729
        %1731 = vmatprep.mubr.bf16.mxu0 %v761
        %1732 = vmatmul.mubr.bf16.gmra.mrb[0].mxu0 %v760
        %v1733 = vpop.f32.mrb[0].mxu0
        %v1734 = vadd.f32 %v1621, %v1733
        %v1735 = vpop.f32.mrb[0].mxu0
        %v1736 = vadd.f32 %v1623, %v1735
        %v1737 = vpop.f32.mrb[0].mxu0
        %v1738 = vadd.f32 %v1625, %v1737
        %v1739 = vpop.f32.mrb[0].mxu0
        %v1740 = vadd.f32 %v1627, %v1739
        %1741 = vmatprep.mubr.bf16.mxu0 %v765
        %1742 = vmatmul.mubr.bf16.gmra.mrb[0].mxu0 %v764
        %v1743 = vpop.f32.mrb[0].mxu0
        %v1744 = vadd.f32 %v1631, %v1743
        %v1745 = vpop.f32.mrb[0].mxu0
        %v1746 = vadd.f32 %v1633, %v1745
        %v1747 = vpop.f32.mrb[0].mxu0
        %v1748 = vadd.f32 %v1635, %v1747
        %v1749 = vpop.f32.mrb[0].mxu0
        %v1750 = vadd.f32 %v1637, %v1749
        %1751 = vmatprep.mubr.bf16.mxu0 %v769
        %1752 = vmatmul.mubr.bf16.gmra.mrb[0].mxu0 %v768
        %v1753 = vpop.f32.mrb[0].mxu0
        %v1754 = vadd.f32 %v1641, %v1753
        %v1755 = vpop.f32.mrb[0].mxu0
        %v1756 = vadd.f32 %v1643, %v1755
        %v1757 = vpop.f32.mrb[0].mxu0
        %v1758 = vadd.f32 %v1645, %v1757
        %v1759 = vpop.f32.mrb[0].mxu0
        %v1760 = vadd.f32 %v1647, %v1759
        %1761 = vmatprep.mubr.bf16.mxu0 %v773
        %1762 = vmatmul.mubr.bf16.gmra.mrb[0].mxu0 %v772
        %v1763 = vpop.f32.mrb[0].mxu0
        %v1764 = vadd.f32 %v1651, %v1763
        %v1765 = vpop.f32.mrb[0].mxu0
        %v1766 = vadd.f32 %v1653, %v1765
        %v1767 = vpop.f32.mrb[0].mxu0
        %v1768 = vadd.f32 %v1655, %v1767
        %v1769 = vpop.f32.mrb[0].mxu0
        %v1770 = vadd.f32 %v1657, %v1769
        %1771 = vmatprep.mubr.bf16.mxu0 %v777
        %1772 = vmatmul.mubr.bf16.gmra.mrb[0].mxu0 %v776
        %v1773 = vpop.f32.mrb[0].mxu0
        %v1774 = vadd.f32 %v1661, %v1773
        %v1775 = vpop.f32.mrb[0].mxu0
        %v1776 = vadd.f32 %v1663, %v1775
        %v1777 = vpop.f32.mrb[0].mxu0
        %v1778 = vadd.f32 %v1665, %v1777
        %v1779 = vpop.f32.mrb[0].mxu0
        %v1780 = vadd.f32 %v1667, %v1779
        %1781 = vmatprep.mubr.bf16.mxu0 %v781
        %1782 = vmatmul.mubr.bf16.gmra.mrb[0].mxu0 %v780
        %v1783 = vpop.f32.mrb[0].mxu0
        %v1784 = vadd.f32 %v1671, %v1783
        %v1785 = vpop.f32.mrb[0].mxu0
        %v1786 = vadd.f32 %v1673, %v1785
        %v1787 = vpop.f32.mrb[0].mxu0
        %v1788 = vadd.f32 %v1675, %v1787
        %v1789 = vpop.f32.mrb[0].mxu0
        %v1790 = vadd.f32 %v1677, %v1789
        %1791 = vmatprep.mubr.bf16.mxu0 %v785
        %1792 = vmatmul.mubr.bf16.gmra.mrb[0].mxu0 %v784
        %v1793 = vpop.f32.mrb[0].mxu0
        %v1794 = vadd.f32 %v1681, %v1793
        %v1795 = vpop.f32.mrb[0].mxu0
        %v1796 = vadd.f32 %v1683, %v1795
        %v1797 = vpop.f32.mrb[0].mxu0
        %v1798 = vadd.f32 %v1685, %v1797
        %v1799 = vpop.f32.mrb[0].mxu0
        %v1800 = vadd.f32 %v1687, %v1799
        %1801 = vdwg.mxu0
        %1802 = vmatprep.subr.bf16.mxu0 %v1323
        %1803 = vmatpush1.bf16.msra.mxu0 %v1322
        %1804 = vmatprep.subr.bf16.mxu0 %v1327
        %1805 = vmatpush1.bf16.msra.mxu0 %v1326
        %1806 = vmatprep.subr.bf16.mxu0 %v1331
        %1807 = vmatpush1.bf16.msra.mxu0 %v1330
        %1808 = vmatprep.subr.bf16.mxu0 %v1335
        %1809 = vmatpush1.bf16.msra.mxu0 %v1334
        %1810 = vmatprep.subr.bf16.mxu0 %v1339
        %1811 = vmatpush1.bf16.msra.mxu0 %v1338
        %1812 = vmatprep.subr.bf16.mxu0 %v1343
        %1813 = vmatpush1.bf16.msra.mxu0 %v1342
        %1814 = vmatprep.subr.bf16.mxu0 %v1347
        %1815 = vmatpush1.bf16.msra.mxu0 %v1346
        %1816 = vmatprep.subr.bf16.mxu0 %v1351
        %1817 = vmatpush1.bf16.msra.mxu0 %v1350
        %1818 = vmatprep.subr.bf16.mxu0 %v1355
        %1819 = vmatpush1.bf16.msra.mxu0 %v1354
        %1820 = vmatprep.subr.bf16.mxu0 %v1359
        %1821 = vmatpush1.bf16.msra.mxu0 %v1358
        %1822 = vmatprep.subr.bf16.mxu0 %v1363
        %1823 = vmatpush1.bf16.msra.mxu0 %v1362
        %1824 = vmatprep.subr.bf16.mxu0 %v1367
        %1825 = vmatpush1.bf16.msra.mxu0 %v1366
        %1826 = vmatprep.subr.bf16.mxu0 %v1371
        %1827 = vmatpush1.bf16.msra.mxu0 %v1370
        %1828 = vmatprep.subr.bf16.mxu0 %v1375
        %1829 = vmatpush1.bf16.msra.mxu0 %v1374
        %1830 = vmatprep.subr.bf16.mxu0 %v1379
        %1831 = vmatpush1.bf16.msra.mxu0 %v1378
        %1832 = vmatprep.subr.bf16.mxu0 %v1383
        %1833 = vmatpush1.bf16.msra.mxu0 %v1382
        %1834 = vmatprep.mubr.bf16.mxu0 %v755
        %1835 = vmatmul.mubr.bf16.gmra.mrb[0].mxu0 %v754
        %v1836 = vpop.f32.mrb[0].mxu0
        %v1837 = vadd.f32 %v927, %v1836
        %v1838 = vpop.f32.mrb[0].mxu0
        %v1839 = vadd.f32 %v931, %v1838
        %v1840 = vpop.f32.mrb[0].mxu0
        %v1841 = vadd.f32 %v927, %v1840
        %v1842 = vpop.f32.mrb[0].mxu0
        %v1843 = vadd.f32 %v931, %v1842
        %1844 = vmatprep.mubr.bf16.mxu0 %v759
        %1845 = vmatmul.mubr.bf16.gmra.mrb[0].mxu0 %v758
        %v1846 = vpop.f32.mrb[0].mxu0
        %v1847 = vadd.f32 %v927, %v1846
        %v1848 = vpop.f32.mrb[0].mxu0
        %v1849 = vadd.f32 %v931, %v1848
        %v1850 = vpop.f32.mrb[0].mxu0
        %v1851 = vadd.f32 %v927, %v1850
        %v1852 = vpop.f32.mrb[0].mxu0
        %v1853 = vadd.f32 %v931, %v1852
        %1854 = vmatprep.mubr.bf16.mxu0 %v763
        %1855 = vmatmul.mubr.bf16.gmra.mrb[0].mxu0 %v762
        %v1856 = vpop.f32.mrb[0].mxu0
        %v1857 = vadd.f32 %v927, %v1856
        %v1858 = vpop.f32.mrb[0].mxu0
        %v1859 = vadd.f32 %v931, %v1858
        %v1860 = vpop.f32.mrb[0].mxu0
        %v1861 = vadd.f32 %v927, %v1860
        %v1862 = vpop.f32.mrb[0].mxu0
        %v1863 = vadd.f32 %v931, %v1862
        %1864 = vmatprep.mubr.bf16.mxu0 %v767
        %1865 = vmatmul.mubr.bf16.gmra.mrb[0].mxu0 %v766
        %v1866 = vpop.f32.mrb[0].mxu0
        %v1867 = vadd.f32 %v927, %v1866
        %v1868 = vpop.f32.mrb[0].mxu0
        %v1869 = vadd.f32 %v931, %v1868
        %v1870 = vpop.f32.mrb[0].mxu0
        %v1871 = vadd.f32 %v927, %v1870
        %v1872 = vpop.f32.mrb[0].mxu0
        %v1873 = vadd.f32 %v931, %v1872
        %1874 = vmatprep.mubr.bf16.mxu0 %v771
        %1875 = vmatmul.mubr.bf16.gmra.mrb[0].mxu0 %v770
        %v1876 = vpop.f32.mrb[0].mxu0
        %v1877 = vadd.f32 %v927, %v1876
        %v1878 = vpop.f32.mrb[0].mxu0
        %v1879 = vadd.f32 %v931, %v1878
        %v1880 = vpop.f32.mrb[0].mxu0
        %v1881 = vadd.f32 %v927, %v1880
        %v1882 = vpop.f32.mrb[0].mxu0
        %v1883 = vadd.f32 %v931, %v1882
        %1884 = vmatprep.mubr.bf16.mxu0 %v775
        %1885 = vmatmul.mubr.bf16.gmra.mrb[0].mxu0 %v774
        %v1886 = vpop.f32.mrb[0].mxu0
        %v1887 = vadd.f32 %v927, %v1886
        %v1888 = vpop.f32.mrb[0].mxu0
        %v1889 = vadd.f32 %v931, %v1888
        %v1890 = vpop.f32.mrb[0].mxu0
        %v1891 = vadd.f32 %v927, %v1890
        %v1892 = vpop.f32.mrb[0].mxu0
        %v1893 = vadd.f32 %v931, %v1892
        %1894 = vmatprep.mubr.bf16.mxu0 %v779
        %1895 = vmatmul.mubr.bf16.gmra.mrb[0].mxu0 %v778
        %v1896 = vpop.f32.mrb[0].mxu0
        %v1897 = vadd.f32 %v927, %v1896
        %v1898 = vpop.f32.mrb[0].mxu0
        %v1899 = vadd.f32 %v931, %v1898
        %v1900 = vpop.f32.mrb[0].mxu0
        %v1901 = vadd.f32 %v927, %v1900
        %v1902 = vpop.f32.mrb[0].mxu0
        %v1903 = vadd.f32 %v931, %v1902
        %1904 = vmatprep.mubr.bf16.mxu0 %v783
        %1905 = vmatmul.mubr.bf16.gmra.mrb[0].mxu0 %v782
        %v1906 = vpop.f32.mrb[0].mxu0
        %v1907 = vadd.f32 %v927, %v1906
        %v1908 = vpop.f32.mrb[0].mxu0
        %v1909 = vadd.f32 %v931, %v1908
        %v1910 = vpop.f32.mrb[0].mxu0
        %v1911 = vadd.f32 %v927, %v1910
        %v1912 = vpop.f32.mrb[0].mxu0
        %v1913 = vadd.f32 %v931, %v1912
        %1914 = vdwg.mxu0
        %1915 = vmatprep.subr.bf16.mxu0 %v1387
        %1916 = vmatpush1.bf16.msra.mxu0 %v1386
        %1917 = vmatprep.subr.bf16.mxu0 %v1391
        %1918 = vmatpush1.bf16.msra.mxu0 %v1390
        %1919 = vmatprep.subr.bf16.mxu0 %v1395
        %1920 = vmatpush1.bf16.msra.mxu0 %v1394
        %1921 = vmatprep.subr.bf16.mxu0 %v1399
        %1922 = vmatpush1.bf16.msra.mxu0 %v1398
        %1923 = vmatprep.subr.bf16.mxu0 %v1403
        %1924 = vmatpush1.bf16.msra.mxu0 %v1402
        %1925 = vmatprep.subr.bf16.mxu0 %v1407
        %1926 = vmatpush1.bf16.msra.mxu0 %v1406
        %1927 = vmatprep.subr.bf16.mxu0 %v1411
        %1928 = vmatpush1.bf16.msra.mxu0 %v1410
        %1929 = vmatprep.subr.bf16.mxu0 %v1415
        %1930 = vmatpush1.bf16.msra.mxu0 %v1414
        %1931 = vmatprep.subr.bf16.mxu0 %v1419
        %1932 = vmatpush1.bf16.msra.mxu0 %v1418
        %1933 = vmatprep.subr.bf16.mxu0 %v1423
        %1934 = vmatpush1.bf16.msra.mxu0 %v1422
        %1935 = vmatprep.subr.bf16.mxu0 %v1427
        %1936 = vmatpush1.bf16.msra.mxu0 %v1426
        %1937 = vmatprep.subr.bf16.mxu0 %v1431
        %1938 = vmatpush1.bf16.msra.mxu0 %v1430
        %1939 = vmatprep.subr.bf16.mxu0 %v1435
        %1940 = vmatpush1.bf16.msra.mxu0 %v1434
        %1941 = vmatprep.subr.bf16.mxu0 %v1439
        %1942 = vmatpush1.bf16.msra.mxu0 %v1438
        %1943 = vmatprep.subr.bf16.mxu0 %v1443
        %1944 = vmatpush1.bf16.msra.mxu0 %v1442
        %1945 = vmatprep.subr.bf16.mxu0 %v1447
        %1946 = vmatpush1.bf16.msra.mxu0 %v1446
        %1947 = vmatprep.mubr.bf16.mxu0 %v757
        %1948 = vmatmul.mubr.bf16.gmra.mrb[0].mxu0 %v756
        %v1949 = vpop.f32.mrb[0].mxu0
        %v1950 = vadd.f32 %v1837, %v1949
        %v1951 = vpop.f32.mrb[0].mxu0
        %v1952 = vadd.f32 %v1839, %v1951
        %v1953 = vpop.f32.mrb[0].mxu0
        %v1954 = vadd.f32 %v1841, %v1953
        %v1955 = vpop.f32.mrb[0].mxu0
        %v1956 = vadd.f32 %v1843, %v1955
        %1957 = vmatprep.mubr.bf16.mxu0 %v761
        %1958 = vmatmul.mubr.bf16.gmra.mrb[0].mxu0 %v760
        %v1959 = vpop.f32.mrb[0].mxu0
        %v1960 = vadd.f32 %v1847, %v1959
        %v1961 = vpop.f32.mrb[0].mxu0
        %v1962 = vadd.f32 %v1849, %v1961
        %v1963 = vpop.f32.mrb[0].mxu0
        %v1964 = vadd.f32 %v1851, %v1963
        %v1965 = vpop.f32.mrb[0].mxu0
        %v1966 = vadd.f32 %v1853, %v1965
        %1967 = vmatprep.mubr.bf16.mxu0 %v765
        %1968 = vmatmul.mubr.bf16.gmra.mrb[0].mxu0 %v764
        %v1969 = vpop.f32.mrb[0].mxu0
        %v1970 = vadd.f32 %v1857, %v1969
        %v1971 = vpop.f32.mrb[0].mxu0
        %v1972 = vadd.f32 %v1859, %v1971
        %v1973 = vpop.f32.mrb[0].mxu0
        %v1974 = vadd.f32 %v1861, %v1973
        %v1975 = vpop.f32.mrb[0].mxu0
        %v1976 = vadd.f32 %v1863, %v1975
        %1977 = vmatprep.mubr.bf16.mxu0 %v769
        %1978 = vmatmul.mubr.bf16.gmra.mrb[0].mxu0 %v768
        %v1979 = vpop.f32.mrb[0].mxu0
        %v1980 = vadd.f32 %v1867, %v1979
        %v1981 = vpop.f32.mrb[0].mxu0
        %v1982 = vadd.f32 %v1869, %v1981
        %v1983 = vpop.f32.mrb[0].mxu0
        %v1984 = vadd.f32 %v1871, %v1983
        %v1985 = vpop.f32.mrb[0].mxu0
        %v1986 = vadd.f32 %v1873, %v1985
        %1987 = vmatprep.mubr.bf16.mxu0 %v773
        %1988 = vmatmul.mubr.bf16.gmra.mrb[0].mxu0 %v772
        %v1989 = vpop.f32.mrb[0].mxu0
        %v1990 = vadd.f32 %v1877, %v1989
        %v1991 = vpop.f32.mrb[0].mxu0
        %v1992 = vadd.f32 %v1879, %v1991
        %v1993 = vpop.f32.mrb[0].mxu0
        %v1994 = vadd.f32 %v1881, %v1993
        %v1995 = vpop.f32.mrb[0].mxu0
        %v1996 = vadd.f32 %v1883, %v1995
        %1997 = vmatprep.mubr.bf16.mxu0 %v777
        %1998 = vmatmul.mubr.bf16.gmra.mrb[0].mxu0 %v776
        %v1999 = vpop.f32.mrb[0].mxu0
        %v2000 = vadd.f32 %v1887, %v1999
        %v2001 = vpop.f32.mrb[0].mxu0
        %v2002 = vadd.f32 %v1889, %v2001
        %v2003 = vpop.f32.mrb[0].mxu0
        %v2004 = vadd.f32 %v1891, %v2003
        %v2005 = vpop.f32.mrb[0].mxu0
        %v2006 = vadd.f32 %v1893, %v2005
        %2007 = vmatprep.mubr.bf16.mxu0 %v781
        %2008 = vmatmul.mubr.bf16.gmra.mrb[0].mxu0 %v780
        %v2009 = vpop.f32.mrb[0].mxu0
        %v2010 = vadd.f32 %v1897, %v2009
        %v2011 = vpop.f32.mrb[0].mxu0
        %v2012 = vadd.f32 %v1899, %v2011
        %v2013 = vpop.f32.mrb[0].mxu0
        %v2014 = vadd.f32 %v1901, %v2013
        %v2015 = vpop.f32.mrb[0].mxu0
        %v2016 = vadd.f32 %v1903, %v2015
        %2017 = vmatprep.mubr.bf16.mxu0 %v785
        %2018 = vmatmul.mubr.bf16.gmra.mrb[0].mxu0 %v784
        %v2019 = vpop.f32.mrb[0].mxu0
        %v2020 = vadd.f32 %v1907, %v2019
        %v2021 = vpop.f32.mrb[0].mxu0
        %v2022 = vadd.f32 %v1909, %v2021
        %v2023 = vpop.f32.mrb[0].mxu0
        %v2024 = vadd.f32 %v1911, %v2023
        %v2025 = vpop.f32.mrb[0].mxu0
        %v2026 = vadd.f32 %v1913, %v2025
        %2027 = vdwg.mxu0
        %v2028 = vmax.f32 %v1724, 0.0
        %v2029 = vmax.f32 %v1726, 0.0
        %v2030 = vmax.f32 %v1950, 0.0
        %v2031 = vmax.f32 %v1952, 0.0
        %v2032 = vmax.f32 %v1728, 0.0
        %v2033 = vmax.f32 %v1730, 0.0
        %v2034 = vmax.f32 %v1954, 0.0
        %v2035 = vmax.f32 %v1956, 0.0
        %v2036 = vmax.f32 %v1734, 0.0
        %v2037 = vmax.f32 %v1736, 0.0
        %v2038 = vmax.f32 %v1960, 0.0
        %v2039 = vmax.f32 %v1962, 0.0
        %v2040 = vmax.f32 %v1738, 0.0
        %v2041 = vmax.f32 %v1740, 0.0
        %v2042 = vmax.f32 %v1964, 0.0
        %v2043 = vmax.f32 %v1966, 0.0
        %v2044 = vmax.f32 %v1744, 0.0
        %v2045 = vmax.f32 %v1746, 0.0
        %v2046 = vmax.f32 %v1970, 0.0
        %v2047 = vmax.f32 %v1972, 0.0
        %v2048 = vmax.f32 %v1748, 0.0
        %v2049 = vmax.f32 %v1750, 0.0
        %v2050 = vmax.f32 %v1974, 0.0
        %v2051 = vmax.f32 %v1976, 0.0
        %v2052 = vmax.f32 %v1754, 0.0
        %v2053 = vmax.f32 %v1756, 0.0
        %v2054 = vmax.f32 %v1980, 0.0
        %v2055 = vmax.f32 %v1982, 0.0
        %v2056 = vmax.f32 %v1758, 0.0
        %v2057 = vmax.f32 %v1760, 0.0
        %v2058 = vmax.f32 %v1984, 0.0
        %v2059 = vmax.f32 %v1986, 0.0
        %v2060 = vmax.f32 %v1764, 0.0
        %v2061 = vmax.f32 %v1766, 0.0
        %v2062 = vmax.f32 %v1990, 0.0
        %v2063 = vmax.f32 %v1992, 0.0
        %v2064 = vmax.f32 %v1768, 0.0
        %v2065 = vmax.f32 %v1770, 0.0
        %v2066 = vmax.f32 %v1994, 0.0
        %v2067 = vmax.f32 %v1996, 0.0
        %v2068 = vmax.f32 %v1774, 0.0
        %v2069 = vmax.f32 %v1776, 0.0
        %v2070 = vmax.f32 %v2000, 0.0
        %v2071 = vmax.f32 %v2002, 0.0
        %v2072 = vmax.f32 %v1778, 0.0
        %v2073 = vmax.f32 %v1780, 0.0
        %v2074 = vmax.f32 %v2004, 0.0
        %v2075 = vmax.f32 %v2006, 0.0
        %v2076 = vmax.f32 %v1784, 0.0
        %v2077 = vmax.f32 %v1786, 0.0
        %v2078 = vmax.f32 %v2010, 0.0
        %v2079 = vmax.f32 %v2012, 0.0
        %v2080 = vmax.f32 %v1788, 0.0
        %v2081 = vmax.f32 %v1790, 0.0
        %v2082 = vmax.f32 %v2014, 0.0
        %v2083 = vmax.f32 %v2016, 0.0
        %v2084 = vmax.f32 %v1794, 0.0
        %v2085 = vmax.f32 %v1796, 0.0
        %v2086 = vmax.f32 %v2020, 0.0
        %v2087 = vmax.f32 %v2022, 0.0
        %v2088 = vmax.f32 %v1798, 0.0
        %v2089 = vmax.f32 %v1800, 0.0
        %v2090 = vmax.f32 %v2024, 0.0
        %v2091 = vmax.f32 %v2026, 0.0
        %v2092 = vpack.c.bf16 %v2032, %v2028
        %v2093 = vpack.c.bf16 %v2033, %v2029
        %v2094 = vpack.c.bf16 %v2034, %v2030
        %v2095 = vpack.c.bf16 %v2035, %v2031
        %v2096 = vpack.c.bf16 %v2040, %v2036
        %v2097 = vpack.c.bf16 %v2041, %v2037
        %v2098 = vpack.c.bf16 %v2042, %v2038
        %v2099 = vpack.c.bf16 %v2043, %v2039
        %v2100 = vpack.c.bf16 %v2048, %v2044
        %v2101 = vpack.c.bf16 %v2049, %v2045
        %v2102 = vpack.c.bf16 %v2050, %v2046
        %v2103 = vpack.c.bf16 %v2051, %v2047
        %v2104 = vpack.c.bf16 %v2056, %v2052
        %v2105 = vpack.c.bf16 %v2057, %v2053
        %v2106 = vpack.c.bf16 %v2058, %v2054
        %v2107 = vpack.c.bf16 %v2059, %v2055
        %v2108 = vpack.c.bf16 %v2064, %v2060
        %v2109 = vpack.c.bf16 %v2065, %v2061
        %v2110 = vpack.c.bf16 %v2066, %v2062
        %v2111 = vpack.c.bf16 %v2067, %v2063
        %v2112 = vpack.c.bf16 %v2072, %v2068
        %v2113 = vpack.c.bf16 %v2073, %v2069
        %v2114 = vpack.c.bf16 %v2074, %v2070
        %v2115 = vpack.c.bf16 %v2075, %v2071
        %v2116 = vpack.c.bf16 %v2080, %v2076
        %v2117 = vpack.c.bf16 %v2081, %v2077
        %v2118 = vpack.c.bf16 %v2082, %v2078
        %v2119 = vpack.c.bf16 %v2083, %v2079
        %v2120 = vpack.c.bf16 %v2088, %v2084
        %v2121 = vpack.c.bf16 %v2089, %v2085
        %v2122 = vpack.c.bf16 %v2090, %v2086
        %v2123 = vpack.c.bf16 %v2091, %v2087
        %v2124 = vld [vmem:[%s5] sm:$0xf]
        %v2125 = vld [vmem:[%s5 + $0x4] sm:$0xf]
        %v2126 = vld [vmem:[%s5 + $0x8] sm:$0xf]
        %v2127 = vld [vmem:[%s5 + $0xc] sm:$0xf]
        %v2128 = vld [vmem:[%s5 + $0x10] sm:$0xf]
        %v2129 = vld [vmem:[%s5 + $0x14] sm:$0xf]
        %v2130 = vld [vmem:[%s5 + $0x18] sm:$0xf]
        %v2131 = vld [vmem:[%s5 + $0x1c] sm:$0xf]
        %v2132 = vld [vmem:[%s5 + $0x20] sm:$0xf]
        %v2133 = vld [vmem:[%s5 + $0x24] sm:$0xf]
        %v2134 = vld [vmem:[%s5 + $0x28] sm:$0xf]
        %v2135 = vld [vmem:[%s5 + $0x2c] sm:$0xf]
        %v2136 = vld [vmem:[%s5 + $0x30] sm:$0xf]
        %v2137 = vld [vmem:[%s5 + $0x34] sm:$0xf]
        %v2138 = vld [vmem:[%s5 + $0x38] sm:$0xf]
        %v2139 = vld [vmem:[%s5 + $0x3c] sm:$0xf]
        %v2140 = vld [vmem:[%s5 + $0x40] sm:$0xf]
        %v2141 = vld [vmem:[%s5 + $0x44] sm:$0xf]
        %v2142 = vld [vmem:[%s5 + $0x48] sm:$0xf]
        %v2143 = vld [vmem:[%s5 + $0x4c] sm:$0xf]
        %v2144 = vld [vmem:[%s5 + $0x50] sm:$0xf]
        %v2145 = vld [vmem:[%s5 + $0x54] sm:$0xf]
        %v2146 = vld [vmem:[%s5 + $0x58] sm:$0xf]
        %v2147 = vld [vmem:[%s5 + $0x5c] sm:$0xf]
        %v2148 = vld [vmem:[%s5 + $0x60] sm:$0xf]
        %v2149 = vld [vmem:[%s5 + $0x64] sm:$0xf]
        %v2150 = vld [vmem:[%s5 + $0x68] sm:$0xf]
        %v2151 = vld [vmem:[%s5 + $0x6c] sm:$0xf]
        %v2152 = vld [vmem:[%s5 + $0x70] sm:$0xf]
        %v2153 = vld [vmem:[%s5 + $0x74] sm:$0xf]
        %v2154 = vld [vmem:[%s5 + $0x78] sm:$0xf]
        %v2155 = vld [vmem:[%s5 + $0x7c] sm:$0xf]
        %v2156 = vld [vmem:[%s5 + $0x80] sm:$0xf]
        %v2157 = vld [vmem:[%s5 + $0x84] sm:$0xf]
        %v2158 = vld [vmem:[%s5 + $0x88] sm:$0xf]
        %v2159 = vld [vmem:[%s5 + $0x8c] sm:$0xf]
        %v2160 = vld [vmem:[%s5 + $0x90] sm:$0xf]
        %v2161 = vld [vmem:[%s5 + $0x94] sm:$0xf]
        %v2162 = vld [vmem:[%s5 + $0x98] sm:$0xf]
        %v2163 = vld [vmem:[%s5 + $0x9c] sm:$0xf]
        %v2164 = vld [vmem:[%s5 + $0xa0] sm:$0xf]
        %v2165 = vld [vmem:[%s5 + $0xa4] sm:$0xf]
        %v2166 = vld [vmem:[%s5 + $0xa8] sm:$0xf]
        %v2167 = vld [vmem:[%s5 + $0xac] sm:$0xf]
        %v2168 = vld [vmem:[%s5 + $0xb0] sm:$0xf]
        %v2169 = vld [vmem:[%s5 + $0xb4] sm:$0xf]
        %v2170 = vld [vmem:[%s5 + $0xb8] sm:$0xf]
        %v2171 = vld [vmem:[%s5 + $0xbc] sm:$0xf]
        %v2172 = vld [vmem:[%s5 + $0xc0] sm:$0xf]
        %v2173 = vld [vmem:[%s5 + $0xc4] sm:$0xf]
        %v2174 = vld [vmem:[%s5 + $0xc8] sm:$0xf]
        %v2175 = vld [vmem:[%s5 + $0xcc] sm:$0xf]
        %v2176 = vld [vmem:[%s5 + $0xd0] sm:$0xf]
        %v2177 = vld [vmem:[%s5 + $0xd4] sm:$0xf]
        %v2178 = vld [vmem:[%s5 + $0xd8] sm:$0xf]
        %v2179 = vld [vmem:[%s5 + $0xdc] sm:$0xf]
        %v2180 = vld [vmem:[%s5 + $0xe0] sm:$0xf]
        %v2181 = vld [vmem:[%s5 + $0xe4] sm:$0xf]
        %v2182 = vld [vmem:[%s5 + $0xe8] sm:$0xf]
        %v2183 = vld [vmem:[%s5 + $0xec] sm:$0xf]
        %v2184 = vld [vmem:[%s5 + $0xf0] sm:$0xf]
        %v2185 = vld [vmem:[%s5 + $0xf4] sm:$0xf]
        %v2186 = vld [vmem:[%s5 + $0xf8] sm:$0xf]
        %v2187 = vld [vmem:[%s5 + $0xfc] sm:$0xf]
        %v2188 = vld [vmem:[%s6] sm:$0x1]
        %v2190 = vlaneseq
        %v2191 = vshrl.u32 %v2190, 7
        %v2192 = vsub.s32 0, %v2191
        %v2193 = vrot.slane %v2188, %v2192
        %v2259 = vunpack.c.l.b16 %v2124
        %v2260 = vunpack.c.l.b16 %v2125
        %v2261 = vunpack.c.l.b16 %v2126
        %v2262 = vunpack.c.l.b16 %v2127
        %v2263 = vunpack.c.l.b16 %v2128
        %v2264 = vunpack.c.l.b16 %v2129
        %v2265 = vunpack.c.l.b16 %v2130
        %v2266 = vunpack.c.l.b16 %v2131
        %v2267 = vunpack.c.l.b16 %v2132
        %v2268 = vunpack.c.l.b16 %v2133
        %v2269 = vunpack.c.l.b16 %v2134
        %v2270 = vunpack.c.l.b16 %v2135
        %v2271 = vunpack.c.l.b16 %v2136
        %v2272 = vunpack.c.l.b16 %v2137
        %v2273 = vunpack.c.l.b16 %v2138
        %v2274 = vunpack.c.l.b16 %v2139
        %v2275 = vunpack.c.l.b16 %v2140
        %v2276 = vunpack.c.l.b16 %v2141
        %v2277 = vunpack.c.l.b16 %v2142
        %v2278 = vunpack.c.l.b16 %v2143
        %v2279 = vunpack.c.l.b16 %v2144
        %v2280 = vunpack.c.l.b16 %v2145
        %v2281 = vunpack.c.l.b16 %v2146
        %v2282 = vunpack.c.l.b16 %v2147
        %v2283 = vunpack.c.l.b16 %v2148
        %v2284 = vunpack.c.l.b16 %v2149
        %v2285 = vunpack.c.l.b16 %v2150
        %v2286 = vunpack.c.l.b16 %v2151
        %v2287 = vunpack.c.l.b16 %v2152
        %v2288 = vunpack.c.l.b16 %v2153
        %v2289 = vunpack.c.l.b16 %v2154
        %v2290 = vunpack.c.l.b16 %v2155
        %v2291 = vunpack.c.l.b16 %v2156
        %v2292 = vunpack.c.l.b16 %v2157
        %v2293 = vunpack.c.l.b16 %v2158
        %v2294 = vunpack.c.l.b16 %v2159
        %v2295 = vunpack.c.l.b16 %v2160
        %v2296 = vunpack.c.l.b16 %v2161
        %v2297 = vunpack.c.l.b16 %v2162
        %v2298 = vunpack.c.l.b16 %v2163
        %v2299 = vunpack.c.l.b16 %v2164
        %v2300 = vunpack.c.l.b16 %v2165
        %v2301 = vunpack.c.l.b16 %v2166
        %v2302 = vunpack.c.l.b16 %v2167
        %v2303 = vunpack.c.l.b16 %v2168
        %v2304 = vunpack.c.l.b16 %v2169
        %v2305 = vunpack.c.l.b16 %v2170
        %v2306 = vunpack.c.l.b16 %v2171
        %v2307 = vunpack.c.l.b16 %v2172
        %v2308 = vunpack.c.l.b16 %v2173
        %v2309 = vunpack.c.l.b16 %v2174
        %v2310 = vunpack.c.l.b16 %v2175
        %v2311 = vunpack.c.l.b16 %v2176
        %v2312 = vunpack.c.l.b16 %v2177
        %v2313 = vunpack.c.l.b16 %v2178
        %v2314 = vunpack.c.l.b16 %v2179
        %v2315 = vunpack.c.l.b16 %v2180
        %v2316 = vunpack.c.l.b16 %v2181
        %v2317 = vunpack.c.l.b16 %v2182
        %v2318 = vunpack.c.l.b16 %v2183
        %v2319 = vunpack.c.l.b16 %v2184
        %v2320 = vunpack.c.l.b16 %v2185
        %v2321 = vunpack.c.l.b16 %v2186
        %v2322 = vunpack.c.l.b16 %v2187
        %v2323 = vpack.c.b16 %v2260, %v2259
        %v2324 = vpack.c.b16 %v2262, %v2261
        %v2325 = vpack.c.b16 %v2264, %v2263
        %v2326 = vpack.c.b16 %v2266, %v2265
        %v2327 = vpack.c.b16 %v2268, %v2267
        %v2328 = vpack.c.b16 %v2270, %v2269
        %v2329 = vpack.c.b16 %v2272, %v2271
        %v2330 = vpack.c.b16 %v2274, %v2273
        %v2331 = vpack.c.b16 %v2276, %v2275
        %v2332 = vpack.c.b16 %v2278, %v2277
        %v2333 = vpack.c.b16 %v2280, %v2279
        %v2334 = vpack.c.b16 %v2282, %v2281
        %v2335 = vpack.c.b16 %v2284, %v2283
        %v2336 = vpack.c.b16 %v2286, %v2285
        %v2337 = vpack.c.b16 %v2288, %v2287
        %v2338 = vpack.c.b16 %v2290, %v2289
        %v2339 = vpack.c.b16 %v2292, %v2291
        %v2340 = vpack.c.b16 %v2294, %v2293
        %v2341 = vpack.c.b16 %v2296, %v2295
        %v2342 = vpack.c.b16 %v2298, %v2297
        %v2343 = vpack.c.b16 %v2300, %v2299
        %v2344 = vpack.c.b16 %v2302, %v2301
        %v2345 = vpack.c.b16 %v2304, %v2303
        %v2346 = vpack.c.b16 %v2306, %v2305
        %v2347 = vpack.c.b16 %v2308, %v2307
        %v2348 = vpack.c.b16 %v2310, %v2309
        %v2349 = vpack.c.b16 %v2312, %v2311
        %v2350 = vpack.c.b16 %v2314, %v2313
        %v2351 = vpack.c.b16 %v2316, %v2315
        %v2352 = vpack.c.b16 %v2318, %v2317
        %v2353 = vpack.c.b16 %v2320, %v2319
        %v2354 = vpack.c.b16 %v2322, %v2321
        %2387 = vmatprep.subr.bf16.mxu0 0
        %2388 = vmatpush1.bf16.msra.mxu0 %v2323
        %2389 = vmatprep.subr.bf16.mxu0 0
        %2390 = vmatpush1.bf16.msra.mxu0 %v2324
        %2391 = vmatprep.subr.bf16.mxu0 0
        %2392 = vmatpush1.bf16.msra.mxu0 %v2325
        %2393 = vmatprep.subr.bf16.mxu0 0
        %2394 = vmatpush1.bf16.msra.mxu0 %v2326
        %2395 = vmatprep.subr.bf16.mxu0 0
        %2396 = vmatpush1.bf16.msra.mxu0 %v2327
        %2397 = vmatprep.subr.bf16.mxu0 0
        %2398 = vmatpush1.bf16.msra.mxu0 %v2328
        %2399 = vmatprep.subr.bf16.mxu0 0
        %2400 = vmatpush1.bf16.msra.mxu0 %v2329
        %2401 = vmatprep.subr.bf16.mxu0 0
        %2402 = vmatpush1.bf16.msra.mxu0 %v2330
        %2403 = vmatprep.subr.bf16.mxu0 0
        %2404 = vmatpush1.bf16.msra.mxu0 %v2331
        %2405 = vmatprep.subr.bf16.mxu0 0
        %2406 = vmatpush1.bf16.msra.mxu0 %v2332
        %2407 = vmatprep.subr.bf16.mxu0 0
        %2408 = vmatpush1.bf16.msra.mxu0 %v2333
        %2409 = vmatprep.subr.bf16.mxu0 0
        %2410 = vmatpush1.bf16.msra.mxu0 %v2334
        %2411 = vmatprep.subr.bf16.mxu0 0
        %2412 = vmatpush1.bf16.msra.mxu0 %v2335
        %2413 = vmatprep.subr.bf16.mxu0 0
        %2414 = vmatpush1.bf16.msra.mxu0 %v2336
        %2415 = vmatprep.subr.bf16.mxu0 0
        %2416 = vmatpush1.bf16.msra.mxu0 %v2337
        %2417 = vmatprep.subr.bf16.mxu0 0
        %2418 = vmatpush1.bf16.msra.mxu0 %v2338
        %2419 = vmatprep.mubr.bf16.mxu0 %v2093
        %2420 = vmatmul.mubr.bf16.gmra.mrb[0].mxu0 %v2092
        %v2421 = vpop.f32.mrb[0].mxu0
        %v2422 = vadd.f32 %v2193, %v2421
        %v2423 = vpop.f32.mrb[0].mxu0
        %v2424 = vpop.f32.mrb[0].mxu0
        %v2425 = vadd.f32 %v2193, %v2424
        %v2426 = vpop.f32.mrb[0].mxu0
        %2427 = vmatprep.mubr.bf16.mxu0 %v2097
        %2428 = vmatmul.mubr.bf16.gmra.mrb[0].mxu0 %v2096
        %v2429 = vpop.f32.mrb[0].mxu0
        %v2430 = vadd.f32 %v2193, %v2429
        %v2431 = vpop.f32.mrb[0].mxu0
        %v2432 = vpop.f32.mrb[0].mxu0
        %v2433 = vadd.f32 %v2193, %v2432
        %v2434 = vpop.f32.mrb[0].mxu0
        %2435 = vmatprep.mubr.bf16.mxu0 %v2101
        %2436 = vmatmul.mubr.bf16.gmra.mrb[0].mxu0 %v2100
        %v2437 = vpop.f32.mrb[0].mxu0
        %v2438 = vadd.f32 %v2193, %v2437
        %v2439 = vpop.f32.mrb[0].mxu0
        %v2440 = vpop.f32.mrb[0].mxu0
        %v2441 = vadd.f32 %v2193, %v2440
        %v2442 = vpop.f32.mrb[0].mxu0
        %2443 = vmatprep.mubr.bf16.mxu0 %v2105
        %2444 = vmatmul.mubr.bf16.gmra.mrb[0].mxu0 %v2104
        %v2445 = vpop.f32.mrb[0].mxu0
        %v2446 = vadd.f32 %v2193, %v2445
        %v2447 = vpop.f32.mrb[0].mxu0
        %v2448 = vpop.f32.mrb[0].mxu0
        %v2449 = vadd.f32 %v2193, %v2448
        %v2450 = vpop.f32.mrb[0].mxu0
        %2451 = vmatprep.mubr.bf16.mxu0 %v2109
        %2452 = vmatmul.mubr.bf16.gmra.mrb[0].mxu0 %v2108
        %v2453 = vpop.f32.mrb[0].mxu0
        %v2454 = vadd.f32 %v2193, %v2453
        %v2455 = vpop.f32.mrb[0].mxu0
        %v2456 = vpop.f32.mrb[0].mxu0
        %v2457 = vadd.f32 %v2193, %v2456
        %v2458 = vpop.f32.mrb[0].mxu0
        %2459 = vmatprep.mubr.bf16.mxu0 %v2113
        %2460 = vmatmul.mubr.bf16.gmra.mrb[0].mxu0 %v2112
        %v2461 = vpop.f32.mrb[0].mxu0
        %v2462 = vadd.f32 %v2193, %v2461
        %v2463 = vpop.f32.mrb[0].mxu0
        %v2464 = vpop.f32.mrb[0].mxu0
        %v2465 = vadd.f32 %v2193, %v2464
        %v2466 = vpop.f32.mrb[0].mxu0
        %2467 = vmatprep.mubr.bf16.mxu0 %v2117
        %2468 = vmatmul.mubr.bf16.gmra.mrb[0].mxu0 %v2116
        %v2469 = vpop.f32.mrb[0].mxu0
        %v2470 = vadd.f32 %v2193, %v2469
        %v2471 = vpop.f32.mrb[0].mxu0
        %v2472 = vpop.f32.mrb[0].mxu0
        %v2473 = vadd.f32 %v2193, %v2472
        %v2474 = vpop.f32.mrb[0].mxu0
        %2475 = vmatprep.mubr.bf16.mxu0 %v2121
        %2476 = vmatmul.mubr.bf16.gmra.mrb[0].mxu0 %v2120
        %v2477 = vpop.f32.mrb[0].mxu0
        %v2478 = vadd.f32 %v2193, %v2477
        %v2479 = vpop.f32.mrb[0].mxu0
        %v2480 = vpop.f32.mrb[0].mxu0
        %v2481 = vadd.f32 %v2193, %v2480
        %v2482 = vpop.f32.mrb[0].mxu0
        %2483 = vdwg.mxu0
        %2484 = vmatprep.subr.bf16.mxu0 0
        %2485 = vmatpush1.bf16.msra.mxu0 %v2339
        %2486 = vmatprep.subr.bf16.mxu0 0
        %2487 = vmatpush1.bf16.msra.mxu0 %v2340
        %2488 = vmatprep.subr.bf16.mxu0 0
        %2489 = vmatpush1.bf16.msra.mxu0 %v2341
        %2490 = vmatprep.subr.bf16.mxu0 0
        %2491 = vmatpush1.bf16.msra.mxu0 %v2342
        %2492 = vmatprep.subr.bf16.mxu0 0
        %2493 = vmatpush1.bf16.msra.mxu0 %v2343
        %2494 = vmatprep.subr.bf16.mxu0 0
        %2495 = vmatpush1.bf16.msra.mxu0 %v2344
        %2496 = vmatprep.subr.bf16.mxu0 0
        %2497 = vmatpush1.bf16.msra.mxu0 %v2345
        %2498 = vmatprep.subr.bf16.mxu0 0
        %2499 = vmatpush1.bf16.msra.mxu0 %v2346
        %2500 = vmatprep.subr.bf16.mxu0 0
        %2501 = vmatpush1.bf16.msra.mxu0 %v2347
        %2502 = vmatprep.subr.bf16.mxu0 0
        %2503 = vmatpush1.bf16.msra.mxu0 %v2348
        %2504 = vmatprep.subr.bf16.mxu0 0
        %2505 = vmatpush1.bf16.msra.mxu0 %v2349
        %2506 = vmatprep.subr.bf16.mxu0 0
        %2507 = vmatpush1.bf16.msra.mxu0 %v2350
        %2508 = vmatprep.subr.bf16.mxu0 0
        %2509 = vmatpush1.bf16.msra.mxu0 %v2351
        %2510 = vmatprep.subr.bf16.mxu0 0
        %2511 = vmatpush1.bf16.msra.mxu0 %v2352
        %2512 = vmatprep.subr.bf16.mxu0 0
        %2513 = vmatpush1.bf16.msra.mxu0 %v2353
        %2514 = vmatprep.subr.bf16.mxu0 0
        %2515 = vmatpush1.bf16.msra.mxu0 %v2354
        %2516 = vmatprep.mubr.bf16.mxu0 %v2095
        %2517 = vmatmul.mubr.bf16.gmra.mrb[0].mxu0 %v2094
        %v2518 = vpop.f32.mrb[0].mxu0
        %v2519 = vadd.f32 %v2422, %v2518
        %v2520 = vpop.f32.mrb[0].mxu0
        %v2521 = vpop.f32.mrb[0].mxu0
        %v2522 = vadd.f32 %v2425, %v2521
        %v2523 = vpop.f32.mrb[0].mxu0
        %2524 = vmatprep.mubr.bf16.mxu0 %v2099
        %2525 = vmatmul.mubr.bf16.gmra.mrb[0].mxu0 %v2098
        %v2526 = vpop.f32.mrb[0].mxu0
        %v2527 = vadd.f32 %v2430, %v2526
        %v2528 = vpop.f32.mrb[0].mxu0
        %v2529 = vpop.f32.mrb[0].mxu0
        %v2530 = vadd.f32 %v2433, %v2529
        %v2531 = vpop.f32.mrb[0].mxu0
        %2532 = vmatprep.mubr.bf16.mxu0 %v2103
        %2533 = vmatmul.mubr.bf16.gmra.mrb[0].mxu0 %v2102
        %v2534 = vpop.f32.mrb[0].mxu0
        %v2535 = vadd.f32 %v2438, %v2534
        %v2536 = vpop.f32.mrb[0].mxu0
        %v2537 = vpop.f32.mrb[0].mxu0
        %v2538 = vadd.f32 %v2441, %v2537
        %v2539 = vpop.f32.mrb[0].mxu0
        %2540 = vmatprep.mubr.bf16.mxu0 %v2107
        %2541 = vmatmul.mubr.bf16.gmra.mrb[0].mxu0 %v2106
        %v2542 = vpop.f32.mrb[0].mxu0
        %v2543 = vadd.f32 %v2446, %v2542
        %v2544 = vpop.f32.mrb[0].mxu0
        %v2545 = vpop.f32.mrb[0].mxu0
        %v2546 = vadd.f32 %v2449, %v2545
        %v2547 = vpop.f32.mrb[0].mxu0
        %2548 = vmatprep.mubr.bf16.mxu0 %v2111
        %2549 = vmatmul.mubr.bf16.gmra.mrb[0].mxu0 %v2110
        %v2550 = vpop.f32.mrb[0].mxu0
        %v2551 = vadd.f32 %v2454, %v2550
        %v2552 = vpop.f32.mrb[0].mxu0
        %v2553 = vpop.f32.mrb[0].mxu0
        %v2554 = vadd.f32 %v2457, %v2553
        %v2555 = vpop.f32.mrb[0].mxu0
        %2556 = vmatprep.mubr.bf16.mxu0 %v2115
        %2557 = vmatmul.mubr.bf16.gmra.mrb[0].mxu0 %v2114
        %v2558 = vpop.f32.mrb[0].mxu0
        %v2559 = vadd.f32 %v2462, %v2558
        %v2560 = vpop.f32.mrb[0].mxu0
        %v2561 = vpop.f32.mrb[0].mxu0
        %v2562 = vadd.f32 %v2465, %v2561
        %v2563 = vpop.f32.mrb[0].mxu0
        %2564 = vmatprep.mubr.bf16.mxu0 %v2119
        %2565 = vmatmul.mubr.bf16.gmra.mrb[0].mxu0 %v2118
        %v2566 = vpop.f32.mrb[0].mxu0
        %v2567 = vadd.f32 %v2470, %v2566
        %v2568 = vpop.f32.mrb[0].mxu0
        %v2569 = vpop.f32.mrb[0].mxu0
        %v2570 = vadd.f32 %v2473, %v2569
        %v2571 = vpop.f32.mrb[0].mxu0
        %2572 = vmatprep.mubr.bf16.mxu0 %v2123
        %2573 = vmatmul.mubr.bf16.gmra.mrb[0].mxu0 %v2122
        %v2574 = vpop.f32.mrb[0].mxu0
        %v2575 = vadd.f32 %v2478, %v2574
        %v2576 = vpop.f32.mrb[0].mxu0
        %v2577 = vpop.f32.mrb[0].mxu0
        %v2578 = vadd.f32 %v2481, %v2577
        %v2579 = vpop.f32.mrb[0].mxu0
        %2580 = vdwg.mxu0
        %2581 = vst [vmem:[%s310] sm:$0xff] %v2519
        %2582 = vst [vmem:[%s310 + $0x8] sm:$0xff] %v2522
        %2583 = vst [vmem:[%s310 + $0x10] sm:$0xff] %v2527
        %2584 = vst [vmem:[%s310 + $0x18] sm:$0xff] %v2530
        %2585 = vst [vmem:[%s310 + $0x20] sm:$0xff] %v2535
        %2586 = vst [vmem:[%s310 + $0x28] sm:$0xff] %v2538
        %2587 = vst [vmem:[%s310 + $0x30] sm:$0xff] %v2543
        %2588 = vst [vmem:[%s310 + $0x38] sm:$0xff] %v2546
        %2589 = vst [vmem:[%s310 + $0x40] sm:$0xff] %v2551
        %2590 = vst [vmem:[%s310 + $0x48] sm:$0xff] %v2554
        %2591 = vst [vmem:[%s310 + $0x50] sm:$0xff] %v2559
        %2592 = vst [vmem:[%s310 + $0x58] sm:$0xff] %v2562
        %2593 = vst [vmem:[%s310 + $0x60] sm:$0xff] %v2567
        %2594 = vst [vmem:[%s310 + $0x68] sm:$0xff] %v2570
        %2595 = vst [vmem:[%s310 + $0x70] sm:$0xff] %v2575
        %2596 = vst [vmem:[%s310 + $0x78] sm:$0xff] %v2578
        %s2597 = smul.u32 16, %s20
        %p2598 = scmp.lt.s32.totalorder %s2597, 31
        %s2599 = scalar_select %p2598, %s2597, 31
        %s2600 = smul.addr %s2599, 8
        %s2601 = scalar_lea.vmem %s7, %s2600
        // Predicated region
        $region57: #{dqn_forward.1} parent=47 // pred_check
          %p2602 = pneg %p190
        $region58: #{dqn_forward.1} parent=47 // pred_check_branch
          %2604 = sbr.rel (%p2602) target = $region60
        $region59: #{dqn_forward.1} parent=47 // pred_region
          %s2605 = smul.u32 16, %s20
        $region60: #{dqn_forward.1} parent=47 // pred_fallthru
          _
      $region48: #{dqn_forward.1} parent=5 // pred_fallthru
        _
      %p2606 = scmp.le.s32.totalorder 2, %s15
      // Predicated region
      $region61: #{dqn_forward.1} parent=5 // pred_check
        %p2607 = pneg %p2606
      $region62: #{dqn_forward.1} parent=5 // pred_check_branch
        %2609 = sbr.rel (%p2607) target = $region64
      $region63: #{dqn_forward.1} parent=5 // pred_region
        %s2610 = ssub.s32 %s15, 2
        // Predicated region
        $region65: #{dqn_forward.1} parent=63 // pred_check
          %p2611 = pneg %p196
        $region66: #{dqn_forward.1} parent=63 // pred_check_branch
          %2613 = sbr.rel (%p2611) target = $region68
        $region67: #{dqn_forward.1} parent=63 // pred_region
          %s2614 = smul.u32 16, %s21
          %p2615 = scmp.lt.s32.totalorder %s2614, 31
          %s2616 = scalar_select %p2615, %s2614, 31
          %s2617 = smul.addr %s2616, 8
          %s2618 = scalar_lea.vmem %s7, %s2617
        $region68: #{dqn_forward.1} parent=63 // pred_fallthru
          _
      $region64: #{dqn_forward.1} parent=5 // pred_fallthru
        _
    $region6: #{dqn_forward.1} parent=1 // loop_footer
      %s19 = sadd.s32 1, %s15
    $region7: #{dqn_forward.1} parent=1 // loop_footer_branch
      %14 = sbr.rel target = $region3
    $region8: #{dqn_forward.1} parent=1 // loop_exit
      _
    %2619 = vsyncpa [#allocation3], 1
    %s2620 = scalar_lea.sflag [#allocation3], 1
    %2621 = vsyncpa %s2620, 1
    %2622 = vsyncpa [#allocation5], 1

</llo_original>
